<compile_context>
chip_gen: v7x
topology: tpu7x:2x2x1
jax: 0.10.0
libtpu: 0.0.40
codegen_flags: <defaults>
</compile_context>

<pallas_src>
import jax
import jax.numpy as jnp
from jax.experimental import pallas as pl
from jax.experimental.pallas import tpu as pltpu


H1 = 512
H2 = 64
H2_PAD = 128   # layer-2 width padded to the 128-lane grain (zero-padded -> exact)


def _round_up(n, m):
    return ((n + m - 1) // m) * m


def _leaky_relu(x, negative_slope=0.01):
    # PyTorch nn.LeakyReLU default negative_slope = 0.01
    return jnp.where(x >= 0, x, negative_slope * x)


def _pick_tile(batch, block_b):
    # Aim for >= 4 grid steps (pipeline overlap everywhere, both TCs busy on v7x),
    # rounded to the sublane grain; once large, round to the 128-lane grain so the
    # lane-dense output store is fully unmasked.
    tb = _round_up(max(pl.cdiv(batch, 4), 1), 8)
    if tb > 128:
        tb = _round_up(tb, 128)
    return min(block_b, tb)


def discriminator_kernel(x_ref, w1_ref, b1_ref, w2_ref, b2_ref, w3_ref, b3_ref,
                         o_ref):
    tb = x_ref.shape[0]
    x = x_ref[...]
    if x.dtype != jnp.bfloat16:            # static dtype check; no-op for bf16 inputs
        x = x.astype(jnp.bfloat16)

    # Linear(input_size, 512) + LeakyReLU   (Dropout(0.25) = identity in eval)
    # bf16 operands into the MXU, f32 accumulation; bias + activation in f32.
    h1 = jnp.dot(x, w1_ref[...], preferred_element_type=jnp.float32) + b1_ref[...]
    h1 = _leaky_relu(h1)

    # Linear(512, 64) + LeakyReLU            (Dropout(0.25) = identity in eval)
    # N padded 64 -> 128 lanes with zero columns (exact, keeps vregs unmasked).
    h2 = jnp.dot(h1.astype(jnp.bfloat16), w2_ref[...],
                 preferred_element_type=jnp.float32) + b2_ref[...]
    h2 = _leaky_relu(h2)

    # Linear(64, 1): VPU multiply + XLU cross-lane reduce (padded w3 lanes are zero).
    h3 = jnp.sum(h2 * w3_ref[...], axis=-1, keepdims=True) + b3_ref[0]   # (tb, 1)

    # Sigmoid on the EUP (exact reciprocal: output feeds a loss / tolerance check).
    sig = pl.reciprocal(1.0 + jnp.exp(-h3), approx=False)                # (tb, 1)

    # Lane-dense store: relayout the tb-element column to a row and write (1,1,tb).
    o_ref[...] = jnp.transpose(sig).reshape(1, 1, tb).astype(o_ref.dtype)


def discriminator_forward(x, params, *, block_b=1024):
    """x: (B, input_size) float32 or bfloat16. params: f32 weights in (in, out) layout."""
    batch, d_in = x.shape

    tb = _pick_tile(batch, block_b)
    num_tiles = pl.cdiv(batch, tb)
    b_pad = num_tiles * tb
    if b_pad != batch:
        # Zero rows are benign end-to-end (finite sigmoid output) and sliced off below.
        x = jnp.pad(x, ((0, b_pad - batch), (0, 0)))

    # bf16 weight copies for the MXU (halves resident VMEM + DMA). Layer 2 / head
    # padded to 128 lanes with zeros (numerically exact).
    w1 = params["w1"].astype(jnp.bfloat16)                                    # (d_in, 512)
    w2 = jnp.zeros((H1, H2_PAD), jnp.bfloat16).at[:, :H2].set(
        params["w2"].astype(jnp.bfloat16))                                    # (512, 128)
    b1 = params["b1"]                                                          # (1, 512) f32
    b2 = jnp.zeros((1, H2_PAD), jnp.float32).at[:, :H2].set(params["b2"])      # (1, 128)
    w3 = jnp.zeros((1, H2_PAD), jnp.float32).at[:, :H2].set(
        params["w3"].reshape(1, H2))                                           # (1, 128)
    b3 = params["b3"].reshape(1)                                               # (1,) SMEM scalar

    try:
        vmem_cap = pltpu.get_tpu_info().vmem_capacity_bytes
    except Exception:
        vmem_cap = 64 * 1024 * 1024   # conservative: v7x physical VMEM per TC

    def build(single_buffer_weights):
        def const_spec(shape):
            # Constant index_map -> fetched once, VMEM-resident across the batch grid.
            if single_buffer_weights:
                return pl.BlockSpec(shape, lambda i: (0, 0),
                                    pipeline_mode=pl.Buffered(1))
            return pl.BlockSpec(shape, lambda i: (0, 0))

        wbuf = 1 if single_buffer_weights else 2
        est = (
            2 * tb * d_in * x.dtype.itemsize          # double-buffered x tiles
            + 2 * 8 * tb * 4                          # (1,1,tb) out tiles (sublane-padded) x2
            + wbuf * (d_in * H1 + H1 * H2_PAD) * 2    # resident bf16 weight matrices
            + wbuf * 8 * (H1 + 2 * H2_PAD) * 4        # biases + w3 row (sublane-padded)
            + tb * (H1 + H2_PAD) * 4                  # f32 h1/h2 if materialized
            + tb * H1 * 2                             # bf16 recast of h1 feeding layer 2
        )
        vmem_limit = int(min(max(2 * est, 32 * 1024 * 1024),
                             int(0.6 * vmem_cap)))

        return pl.pallas_call(
            discriminator_kernel,
            out_shape=jax.ShapeDtypeStruct((num_tiles, 1, tb), jnp.float32),
            grid_spec=pltpu.PrefetchScalarGridSpec(
                num_scalar_prefetch=0,
                grid=(num_tiles,),
                in_specs=[
                    pl.BlockSpec((tb, d_in), lambda i: (i, 0)),
                    const_spec((d_in, H1)),
                    const_spec((1, H1)),
                    const_spec((H1, H2_PAD)),
                    const_spec((1, H2_PAD)),
                    const_spec((1, H2_PAD)),
                    pl.BlockSpec(memory_space=pltpu.MemorySpace.SMEM),
                ],
                out_specs=pl.BlockSpec((1, 1, tb), lambda i: (i, 0, 0)),
            ),
            compiler_params=pltpu.CompilerParams(
                dimension_semantics=("parallel",),   # shards batch tiles across v7x TCs
                vmem_limit_bytes=vmem_limit,
            ),
        )

    args = (x, w1, b1, w2, b2, w3, b3)
    try:
        out = build(True)(*args)
    except Exception:
        # Fallback for Pallas builds where pipeline_mode=pl.Buffered(1) is not honored
        # on top-level BlockSpecs: accept default double-buffered weights.
        out = build(False)(*args)

    return out.reshape(b_pad, 1)[:batch]


def init_params(key, input_size):
    """Deterministic init mirroring PyTorch Linear's U(-1/sqrt(fan_in), 1/sqrt(fan_in))."""
    ks = jax.random.split(key, 6)

    def linear(kw, kb, fan_in, fan_out):
        bound = 1.0 / jnp.sqrt(fan_in)
        w = jax.random.uniform(kw, (fan_in, fan_out), jnp.float32, -bound, bound)
        b = jax.random.uniform(kb, (1, fan_out), jnp.float32, -bound, bound)
        return w, b

    w1, b1 = linear(ks[0], ks[1], input_size, H1)
    w2, b2 = linear(ks[2], ks[3], H1, H2)
    w3, b3 = linear(ks[4], ks[5], H2, 1)
    return {"w1": w1, "b1": b1, "w2": w2, "b2": b2, "w3": w3, "b3": b3}


def reference_forward(x, p):
    h1 = _leaky_relu(x @ p["w1"] + p["b1"])
    h2 = _leaky_relu(h1 @ p["w2"] + p["b2"])
    h3 = h2 @ p["w3"] + p["b3"]
    return jax.nn.sigmoid(h3)


if __name__ == "__main__":
    key = jax.random.PRNGKey(0)
    k_param, k_x = jax.random.split(key)

    batch = 8
    input_size = 128     # small flattened-image feature size

    params = init_params(k_param, input_size)
    x = jax.random.normal(k_x, (batch, input_size), dtype=jnp.float32)

    out = discriminator_forward(x, params)
    out = jax.block_until_ready(out)

    ref = reference_forward(x, params)
    assert out.shape == (batch, 1), out.shape
    # Tolerance covers bf16 MXU operands vs the pure-f32 reference.
    assert jnp.allclose(out, ref, atol=2e-2, rtol=2e-2), "mismatch vs reference"

    print("KERNEL_OK")
</pallas_src>

<mosaic_0001>
module attributes {stable_mosaic.version = 11 : i64} {
  func.func @discriminator_kernel(%arg0: i32, %arg1: memref<8x128xf32, #tpu.memory_space<vmem>>, %arg2: memref<128x512xbf16, #tpu.memory_space<vmem>>, %arg3: memref<1x512xf32, #tpu.memory_space<vmem>>, %arg4: memref<512x128xbf16, #tpu.memory_space<vmem>>, %arg5: memref<1x128xf32, #tpu.memory_space<vmem>>, %arg6: memref<1x128xf32, #tpu.memory_space<vmem>>, %arg7: memref<1xf32, #tpu.memory_space<smem>>, %arg8: memref<1x1x8xf32, #tpu.memory_space<vmem>>) attributes {dimension_semantics = [#tpu.dimension_semantics<parallel>], iteration_bounds = array<i64: 1>, scalar_prefetch = 0 : i64, scratch_operands = 0 : i64, tpu.core_type = #tpu.core_type<tc>, window_params = [{transform_indices = @transform_0, window_bounds = array<i64: 8, 128>}, {pipeline_mode = #tpu.pipeline_mode<synchronous>, transform_indices = @transform_1, window_bounds = array<i64: 128, 512>}, {pipeline_mode = #tpu.pipeline_mode<synchronous>, transform_indices = @transform_2, window_bounds = array<i64: 1, 512>}, {pipeline_mode = #tpu.pipeline_mode<synchronous>, transform_indices = @transform_3, window_bounds = array<i64: 512, 128>}, {pipeline_mode = #tpu.pipeline_mode<synchronous>, transform_indices = @transform_4, window_bounds = array<i64: 1, 128>}, {pipeline_mode = #tpu.pipeline_mode<synchronous>, transform_indices = @transform_5, window_bounds = array<i64: 1, 128>}, {transform_indices = @transform_6, window_bounds = array<i64: 1>}, {transform_indices = @transform_7, window_bounds = array<i64: 1, 1, 8>}]} {
    %c0 = arith.constant 0 : index
    %c0_0 = arith.constant 0 : index
    %0 = vector.load %arg1[%c0, %c0_0] : memref<8x128xf32, #tpu.memory_space<vmem>>, vector<8x128xf32>
    %1 = arith.truncf %0 : vector<8x128xf32> to vector<8x128xbf16>
    %c0_1 = arith.constant 0 : index
    %c0_2 = arith.constant 0 : index
    %2 = vector.load %arg2[%c0_1, %c0_2] : memref<128x512xbf16, #tpu.memory_space<vmem>>, vector<128x512xbf16>
    %cst = arith.constant dense<0.000000e+00> : vector<8x512xf32>
    %3 = tpu.matmul %1, %2, %cst {dimension_numbers = #tpu.dot_dimension_numbers<[1], [0], [0], [1], [0, 0, 1, 1], [], []>} : vector<8x128xbf16>, vector<128x512xbf16>, vector<8x512xf32> -> vector<8x512xf32>
    %c0_3 = arith.constant 0 : index
    %c0_4 = arith.constant 0 : index
    %4 = vector.load %arg3[%c0_3, %c0_4] : memref<1x512xf32, #tpu.memory_space<vmem>>, vector<1x512xf32>
    %5 = vector.broadcast %4 : vector<1x512xf32> to vector<8x512xf32>
    %6 = arith.addf %3, %5 : vector<8x512xf32>
    %cst_5 = arith.constant 0.000000e+00 : f32
    %7 = vector.broadcast %cst_5 : f32 to vector<8x512xf32>
    %8 = arith.cmpf oge, %6, %7 : vector<8x512xf32>
    %cst_6 = arith.constant 0.00999999977 : f32
    %9 = vector.broadcast %cst_6 : f32 to vector<8x512xf32>
    %10 = arith.mulf %9, %6 : vector<8x512xf32>
    %11 = arith.select %8, %6, %10 : vector<8x512xi1>, vector<8x512xf32>
    %12 = arith.truncf %11 : vector<8x512xf32> to vector<8x512xbf16>
    %c0_7 = arith.constant 0 : index
    %c0_8 = arith.constant 0 : index
    %13 = vector.load %arg4[%c0_7, %c0_8] : memref<512x128xbf16, #tpu.memory_space<vmem>>, vector<512x128xbf16>
    %cst_9 = arith.constant dense<0.000000e+00> : vector<8x128xf32>
    %14 = tpu.matmul %12, %13, %cst_9 {dimension_numbers = #tpu.dot_dimension_numbers<[1], [0], [0], [1], [0, 0, 1, 1], [], []>} : vector<8x512xbf16>, vector<512x128xbf16>, vector<8x128xf32> -> vector<8x128xf32>
    %c0_10 = arith.constant 0 : index
    %c0_11 = arith.constant 0 : index
    %15 = vector.load %arg5[%c0_10, %c0_11] : memref<1x128xf32, #tpu.memory_space<vmem>>, vector<1x128xf32>
    %16 = vector.broadcast %15 : vector<1x128xf32> to vector<8x128xf32>
    %17 = arith.addf %14, %16 : vector<8x128xf32>
    %cst_12 = arith.constant 0.000000e+00 : f32
    %18 = vector.broadcast %cst_12 : f32 to vector<8x128xf32>
    %19 = arith.cmpf oge, %17, %18 : vector<8x128xf32>
    %cst_13 = arith.constant 0.00999999977 : f32
    %20 = vector.broadcast %cst_13 : f32 to vector<8x128xf32>
    %21 = arith.mulf %20, %17 : vector<8x128xf32>
    %22 = arith.select %19, %17, %21 : vector<8x128xi1>, vector<8x128xf32>
    %c0_14 = arith.constant 0 : index
    %c0_15 = arith.constant 0 : index
    %23 = vector.load %arg6[%c0_14, %c0_15] : memref<1x128xf32, #tpu.memory_space<vmem>>, vector<1x128xf32>
    %24 = vector.broadcast %23 : vector<1x128xf32> to vector<8x128xf32>
    %25 = arith.mulf %22, %24 : vector<8x128xf32>
    %cst_16 = arith.constant dense<0.000000e+00> : vector<8xf32>
    %26 = vector.multi_reduction <add>, %25, %cst_16 [1] : vector<8x128xf32> to vector<8xf32>
    %27 = vector.shape_cast %26 : vector<8xf32> to vector<8x1xf32>
    %c0_17 = arith.constant 0 : index
    %28 = memref.load %arg7[%c0_17] : memref<1xf32, #tpu.memory_space<smem>>
    %29 = vector.broadcast %28 : f32 to vector<8x1xf32>
    %30 = arith.addf %27, %29 : vector<8x1xf32>
    %cst_18 = arith.constant 0.000000e+00 : f32
    %31 = vector.broadcast %cst_18 : f32 to vector<8x1xf32>
    %32 = arith.subf %31, %30 : vector<8x1xf32>
    %33 = math.exp %32 : vector<8x1xf32>
    %cst_19 = arith.constant 1.000000e+00 : f32
    %34 = vector.broadcast %cst_19 : f32 to vector<8x1xf32>
    %35 = arith.addf %34, %33 : vector<8x1xf32>
    %36 = tpu.reciprocal %35 : vector<8x1xf32> -> vector<8x1xf32>
    %37 = tpu.transpose %36, [1, 0] : vector<8x1xf32> -> vector<1x8xf32>
    %38 = vector.shape_cast %37 : vector<1x8xf32> to vector<1x1x8xf32>
    %c0_20 = arith.constant 0 : index
    %c0_21 = arith.constant 0 : index
    %c0_22 = arith.constant 0 : index
    %39 = vector.load %arg8[%c0_20, %c0_21, %c0_22] : memref<1x1x8xf32, #tpu.memory_space<vmem>>, vector<1x1x8xf32>
    tpu.vector_store %arg8[%c0_20, %c0_21, %c0_22], %38 {strides = array<i32>} : memref<1x1x8xf32, #tpu.memory_space<vmem>>, vector<1x1x8xf32>,
    return
  }
  func.func @transform_0(%arg0: i32) -> (i32, i32) {
    %c0_i32 = arith.constant 0 : i32
    %c0_i32_0 = arith.constant 0 : i32
    return %arg0, %c0_i32 : i32, i32
  }
  func.func @transform_1(%arg0: i32) -> (i32, i32) {
    %c0_i32 = arith.constant 0 : i32
    %c0_i32_0 = arith.constant 0 : i32
    %c0_i32_1 = arith.constant 0 : i32
    return %c0_i32, %c0_i32_0 : i32, i32
  }
  func.func @transform_2(%arg0: i32) -> (i32, i32) {
    %c0_i32 = arith.constant 0 : i32
    %c0_i32_0 = arith.constant 0 : i32
    %c0_i32_1 = arith.constant 0 : i32
    return %c0_i32, %c0_i32_0 : i32, i32
  }
  func.func @transform_3(%arg0: i32) -> (i32, i32) {
    %c0_i32 = arith.constant 0 : i32
    %c0_i32_0 = arith.constant 0 : i32
    %c0_i32_1 = arith.constant 0 : i32
    return %c0_i32, %c0_i32_0 : i32, i32
  }
  func.func @transform_4(%arg0: i32) -> (i32, i32) {
    %c0_i32 = arith.constant 0 : i32
    %c0_i32_0 = arith.constant 0 : i32
    %c0_i32_1 = arith.constant 0 : i32
    return %c0_i32, %c0_i32_0 : i32, i32
  }
  func.func @transform_5(%arg0: i32) -> (i32, i32) {
    %c0_i32 = arith.constant 0 : i32
    %c0_i32_0 = arith.constant 0 : i32
    %c0_i32_1 = arith.constant 0 : i32
    return %c0_i32, %c0_i32_0 : i32, i32
  }
  func.func @transform_6(%arg0: i32) -> i32 {
    %c0_i32 = arith.constant 0 : i32
    %c0_i32_0 = arith.constant 0 : i32
    return %c0_i32 : i32
  }
  func.func @transform_7(%arg0: i32) -> (i32, i32, i32) {
    %c0_i32 = arith.constant 0 : i32
    %c0_i32_0 = arith.constant 0 : i32
    %c0_i32_1 = arith.constant 0 : i32
    return %arg0, %c0_i32, %c0_i32_0 : i32, i32, i32
  }
}

module attributes {stable_mosaic.version = 11 : i64} {
  func.func @discriminator_kernel(%arg0: i32, %arg1: memref<8x128xf32, #tpu.memory_space<vmem>>, %arg2: memref<128x512xbf16, #tpu.memory_space<vmem>>, %arg3: memref<1x512xf32, #tpu.memory_space<vmem>>, %arg4: memref<512x128xbf16, #tpu.memory_space<vmem>>, %arg5: memref<1x128xf32, #tpu.memory_space<vmem>>, %arg6: memref<1x128xf32, #tpu.memory_space<vmem>>, %arg7: memref<1xf32, #tpu.memory_space<smem>>, %arg8: memref<1x1x8xf32, #tpu.memory_space<vmem>>) attributes {dimension_semantics = [#tpu.dimension_semantics<parallel>], iteration_bounds = array<i64: 1>, scalar_prefetch = 0 : i64, scratch_operands = 0 : i64, tpu.core_type = #tpu.core_type<tc>, window_params = [{transform_indices = @transform_0, window_bounds = array<i64: 8, 128>}, {pipeline_mode = #tpu.pipeline_mode<synchronous>, transform_indices = @transform_1, window_bounds = array<i64: 128, 512>}, {pipeline_mode = #tpu.pipeline_mode<synchronous>, transform_indices = @transform_2, window_bounds = array<i64: 1, 512>}, {pipeline_mode = #tpu.pipeline_mode<synchronous>, transform_indices = @transform_3, window_bounds = array<i64: 512, 128>}, {pipeline_mode = #tpu.pipeline_mode<synchronous>, transform_indices = @transform_4, window_bounds = array<i64: 1, 128>}, {pipeline_mode = #tpu.pipeline_mode<synchronous>, transform_indices = @transform_5, window_bounds = array<i64: 1, 128>}, {transform_indices = @transform_6, window_bounds = array<i64: 1>}, {transform_indices = @transform_7, window_bounds = array<i64: 1, 1, 8>}]} {
    %c0 = arith.constant 0 : index
    %c0_0 = arith.constant 0 : index
    %0 = vector.load %arg1[%c0, %c0_0] : memref<8x128xf32, #tpu.memory_space<vmem>>, vector<8x128xf32>
    %1 = arith.truncf %0 : vector<8x128xf32> to vector<8x128xbf16>
    %c0_1 = arith.constant 0 : index
    %c0_2 = arith.constant 0 : index
    %2 = vector.load %arg2[%c0_1, %c0_2] : memref<128x512xbf16, #tpu.memory_space<vmem>>, vector<128x512xbf16>
    %cst = arith.constant dense<0.000000e+00> : vector<8x512xf32>
    %3 = tpu.matmul %1, %2, %cst {dimension_numbers = #tpu.dot_dimension_numbers<[1], [0], [0], [1], [0, 0, 1, 1], [], []>} : vector<8x128xbf16>, vector<128x512xbf16>, vector<8x512xf32> -> vector<8x512xf32>
    %c0_3 = arith.constant 0 : index
    %c0_4 = arith.constant 0 : index
    %4 = vector.load %arg3[%c0_3, %c0_4] : memref<1x512xf32, #tpu.memory_space<vmem>>, vector<1x512xf32>
    %5 = vector.broadcast %4 : vector<1x512xf32> to vector<8x512xf32>
    %6 = arith.addf %3, %5 : vector<8x512xf32>
    %cst_5 = arith.constant 0.000000e+00 : f32
    %7 = vector.broadcast %cst_5 : f32 to vector<8x512xf32>
    %8 = arith.cmpf oge, %6, %7 : vector<8x512xf32>
    %cst_6 = arith.constant 0.00999999977 : f32
    %9 = vector.broadcast %cst_6 : f32 to vector<8x512xf32>
    %10 = arith.mulf %9, %6 : vector<8x512xf32>
    %11 = arith.select %8, %6, %10 : vector<8x512xi1>, vector<8x512xf32>
    %12 = arith.truncf %11 : vector<8x512xf32> to vector<8x512xbf16>
    %c0_7 = arith.constant 0 : index
    %c0_8 = arith.constant 0 : index
    %13 = vector.load %arg4[%c0_7, %c0_8] : memref<512x128xbf16, #tpu.memory_space<vmem>>, vector<512x128xbf16>
    %cst_9 = arith.constant dense<0.000000e+00> : vector<8x128xf32>
    %14 = tpu.matmul %12, %13, %cst_9 {dimension_numbers = #tpu.dot_dimension_numbers<[1], [0], [0], [1], [0, 0, 1, 1], [], []>} : vector<8x512xbf16>, vector<512x128xbf16>, vector<8x128xf32> -> vector<8x128xf32>
    %c0_10 = arith.constant 0 : index
    %c0_11 = arith.constant 0 : index
    %15 = vector.load %arg5[%c0_10, %c0_11] : memref<1x128xf32, #tpu.memory_space<vmem>>, vector<1x128xf32>
    %16 = vector.broadcast %15 : vector<1x128xf32> to vector<8x128xf32>
    %17 = arith.addf %14, %16 : vector<8x128xf32>
    %cst_12 = arith.constant 0.000000e+00 : f32
    %18 = vector.broadcast %cst_12 : f32 to vector<8x128xf32>
    %19 = arith.cmpf oge, %17, %18 : vector<8x128xf32>
    %cst_13 = arith.constant 0.00999999977 : f32
    %20 = vector.broadcast %cst_13 : f32 to vector<8x128xf32>
    %21 = arith.mulf %20, %17 : vector<8x128xf32>
    %22 = arith.select %19, %17, %21 : vector<8x128xi1>, vector<8x128xf32>
    %c0_14 = arith.constant 0 : index
    %c0_15 = arith.constant 0 : index
    %23 = vector.load %arg6[%c0_14, %c0_15] : memref<1x128xf32, #tpu.memory_space<vmem>>, vector<1x128xf32>
    %24 = vector.broadcast %23 : vector<1x128xf32> to vector<8x128xf32>
    %25 = arith.mulf %22, %24 : vector<8x128xf32>
    %cst_16 = arith.constant dense<0.000000e+00> : vector<8xf32>
    %26 = vector.multi_reduction <add>, %25, %cst_16 [1] : vector<8x128xf32> to vector<8xf32>
    %27 = vector.shape_cast %26 : vector<8xf32> to vector<8x1xf32>
    %c0_17 = arith.constant 0 : index
    %28 = memref.load %arg7[%c0_17] : memref<1xf32, #tpu.memory_space<smem>>
    %29 = vector.broadcast %28 : f32 to vector<8x1xf32>
    %30 = arith.addf %27, %29 : vector<8x1xf32>
    %cst_18 = arith.constant 0.000000e+00 : f32
    %31 = vector.broadcast %cst_18 : f32 to vector<8x1xf32>
    %32 = arith.subf %31, %30 : vector<8x1xf32>
    %33 = math.exp %32 : vector<8x1xf32>
    %cst_19 = arith.constant 1.000000e+00 : f32
    %34 = vector.broadcast %cst_19 : f32 to vector<8x1xf32>
    %35 = arith.addf %34, %33 : vector<8x1xf32>
    %36 = tpu.reciprocal %35 : vector<8x1xf32> -> vector<8x1xf32>
    %37 = tpu.transpose %36, [1, 0] : vector<8x1xf32> -> vector<1x8xf32>
    %38 = vector.shape_cast %37 : vector<1x8xf32> to vector<1x1x8xf32>
    %c0_20 = arith.constant 0 : index
    %c0_21 = arith.constant 0 : index
    %c0_22 = arith.constant 0 : index
    %39 = vector.load %arg8[%c0_20, %c0_21, %c0_22] : memref<1x1x8xf32, #tpu.memory_space<vmem>>, vector<1x1x8xf32>
    tpu.vector_store %arg8[%c0_20, %c0_21, %c0_22], %38 {strides = array<i32>} : memref<1x1x8xf32, #tpu.memory_space<vmem>>, vector<1x1x8xf32>,
    return
  }
  func.func @transform_0(%arg0: i32) -> (i32, i32) {
    %c0_i32 = arith.constant 0 : i32
    %c0_i32_0 = arith.constant 0 : i32
    return %arg0, %c0_i32 : i32, i32
  }
  func.func @transform_1(%arg0: i32) -> (i32, i32) {
    %c0_i32 = arith.constant 0 : i32
    %c0_i32_0 = arith.constant 0 : i32
    %c0_i32_1 = arith.constant 0 : i32
    return %c0_i32, %c0_i32_0 : i32, i32
  }
  func.func @transform_2(%arg0: i32) -> (i32, i32) {
    %c0_i32 = arith.constant 0 : i32
    %c0_i32_0 = arith.constant 0 : i32
    %c0_i32_1 = arith.constant 0 : i32
    return %c0_i32, %c0_i32_0 : i32, i32
  }
  func.func @transform_3(%arg0: i32) -> (i32, i32) {
    %c0_i32 = arith.constant 0 : i32
    %c0_i32_0 = arith.constant 0 : i32
    %c0_i32_1 = arith.constant 0 : i32
    return %c0_i32, %c0_i32_0 : i32, i32
  }
  func.func @transform_4(%arg0: i32) -> (i32, i32) {
    %c0_i32 = arith.constant 0 : i32
    %c0_i32_0 = arith.constant 0 : i32
    %c0_i32_1 = arith.constant 0 : i32
    return %c0_i32, %c0_i32_0 : i32, i32
  }
  func.func @transform_5(%arg0: i32) -> (i32, i32) {
    %c0_i32 = arith.constant 0 : i32
    %c0_i32_0 = arith.constant 0 : i32
    %c0_i32_1 = arith.constant 0 : i32
    return %c0_i32, %c0_i32_0 : i32, i32
  }
  func.func @transform_6(%arg0: i32) -> i32 {
    %c0_i32 = arith.constant 0 : i32
    %c0_i32_0 = arith.constant 0 : i32
    return %c0_i32 : i32
  }
  func.func @transform_7(%arg0: i32) -> (i32, i32, i32) {
    %c0_i32 = arith.constant 0 : i32
    %c0_i32_0 = arith.constant 0 : i32
    %c0_i32_1 = arith.constant 0 : i32
    return %arg0, %c0_i32, %c0_i32_0 : i32, i32, i32
  }
}

</mosaic_0001>

<llo_original>
// kernel: tpu_custom_call.1
$region0: #{tpu_custom_call.1}
  #allocation0 [shape = 'u32[]', space=smem, size = 0x4, offset = 0x4, fixed_abs, tag = 'smem constant byte address 0x4 - core index']
  #allocation1 [shape = 'u32[144,128]{1,0:T(1,128)}', space=vmem, size = 0x12000, scoped, tag = 'internal scratch']
  #allocation2 [shape = 'f32[1]{0:T(128)S(6)}', space=smem, size = 0x200, scoped, tag = 'scoped memory for tpu_custom_call.1']
  %s0 = inlined_call_operand.hbm [shape: f32[8,128], index: 0, kind: input, shape index: {}]
  %s1 = inlined_call_operand.hbm [shape: bf16[128,512], index: 1, kind: input, shape index: {}]
  %s2 = inlined_call_operand.vmem [shape: f32[1,512], index: 2, kind: input, shape index: {}]
  %s3 = inlined_call_operand.hbm [shape: bf16[512,128], index: 3, kind: input, shape index: {}]
  %s4 = inlined_call_operand.vmem [shape: f32[1,128], index: 4, kind: input, shape index: {}]
  %s5 = inlined_call_operand.vmem [shape: f32[1,128], index: 5, kind: input, shape index: {}]
  %s6 = inlined_call_operand.<no memory space> [shape: f32[1], index: 6, kind: input, shape index: {}]
  %s7 = inlined_call_operand.hbm [shape: f32[1,1,8], index: 7, kind: output, shape index: {}]
  %s8 = sld [smem:[#allocation0]]
  $region50: #{tpu_custom_call.1} parent=0
    _
  %s10 = ssub.s32 1, %s8
  %s11 = scalar_select 0, %s10, %s8
  %12 = sst [smem:[#allocation2]] %s6
  $region1: #{tpu_custom_call.1} parent=0
    #allocation3 [shape = 'u8[4096]{0}', space=vmem, size = 0x1000, scoped, tag = 'input window, operand 0, single buffered']
    #allocation4 [shape = 's32[1]{0}', space=sflag, size = 0x4, scoped, tag = 'scoped memory for tpu_custom_call.1']
    #allocation5 [shape = 's32[1]{0}', space=sflag, size = 0x4, scoped, tag = 'scoped memory for tpu_custom_call.1']
    #allocation6 [shape = 'u8[131072]{0}', space=vmem, size = 0x20000, scoped, tag = 'input window, operand 1, single buffered']
    #allocation7 [shape = 's32[1]{0}', space=sflag, size = 0x4, scoped, tag = 'scoped memory for tpu_custom_call.1']
    #allocation8 [shape = 'u8[131072]{0}', space=vmem, size = 0x20000, scoped, tag = 'input window, operand 3, single buffered']
    #allocation9 [shape = 'u8[512]{0}', space=vmem, size = 0x400, scoped, tag = 'output window, operand 0, single buffered']
    %13 = vsyncpa [#allocation4], 0
    %14 = vsyncpa [#allocation7], 0
    %15 = vsyncpa [#allocation5], 0
    // Predicated region
    $region2: #{tpu_custom_call.1} parent=1 // pred_check
      _
    $region3: #{tpu_custom_call.1} parent=1 // pred_check_branch
      %17 = sbr.rel (0) target = $region5
    $region4: #{tpu_custom_call.1} parent=1 // pred_region
      %s19 = ssub.s32 128, 128
      %20 = vsyncadd [#allocation4], %s19
      %s22 = sshll.u32 [#allocation3], 4
      %s23 = int_to_ptr.vmem [resolvable:$true] %s22
      %25 = dma.hbm_to_vmem [thread:$0]  %s0, 128, %s23, [#allocation4]
    $region5: #{tpu_custom_call.1} parent=1 // pred_fallthru
      _
    // Predicated region
    $region6: #{tpu_custom_call.1} parent=1 // pred_check
      _
    $region7: #{tpu_custom_call.1} parent=1 // pred_check_branch
      %27 = sbr.rel (0) target = $region9
    $region8: #{tpu_custom_call.1} parent=1 // pred_region
      %s29 = ssub.s32 4096, 4096
      %30 = vsyncadd [#allocation7], %s29
      %s31 = sshll.u32 [#allocation6], 4
      %s32 = int_to_ptr.vmem [resolvable:$true] %s31
      %37 = dma.hbm_to_vmem [thread:$0]  %s1, 4096, %s32, [#allocation7], 256, 256, 16
    $region9: #{tpu_custom_call.1} parent=1 // pred_fallthru
      _
    // Predicated region
    $region10: #{tpu_custom_call.1} parent=1 // pred_check
      _
    $region11: #{tpu_custom_call.1} parent=1 // pred_check_branch
      %39 = sbr.rel (0) target = $region13
    $region12: #{tpu_custom_call.1} parent=1 // pred_region
      _
    $region13: #{tpu_custom_call.1} parent=1 // pred_fallthru
      _
    // Predicated region
    $region14: #{tpu_custom_call.1} parent=1 // pred_check
      _
    $region15: #{tpu_custom_call.1} parent=1 // pred_check_branch
      %41 = sbr.rel (0) target = $region17
    $region16: #{tpu_custom_call.1} parent=1 // pred_region
      %s43 = ssub.s32 4096, 4096
      %44 = vsyncadd [#allocation7], %s43
      %s45 = sshll.u32 [#allocation8], 4
      %s46 = int_to_ptr.vmem [resolvable:$true] %s45
      %51 = dma.hbm_to_vmem [thread:$0]  %s3, 4096, %s46, [#allocation7], 64, 64, 4
    $region17: #{tpu_custom_call.1} parent=1 // pred_fallthru
      _
    // Predicated region
    $region18: #{tpu_custom_call.1} parent=1 // pred_check
      _
    $region19: #{tpu_custom_call.1} parent=1 // pred_check_branch
      %53 = sbr.rel (0) target = $region21
    $region20: #{tpu_custom_call.1} parent=1 // pred_region
      _
    $region21: #{tpu_custom_call.1} parent=1 // pred_fallthru
      _
    // Predicated region
    $region22: #{tpu_custom_call.1} parent=1 // pred_check
      _
    $region23: #{tpu_custom_call.1} parent=1 // pred_check_branch
      %55 = sbr.rel (0) target = $region25
    $region24: #{tpu_custom_call.1} parent=1 // pred_region
      _
    $region25: #{tpu_custom_call.1} parent=1 // pred_fallthru
      _
    // Predicated region
    $region26: #{tpu_custom_call.1} parent=1 // pred_check
      _
    $region27: #{tpu_custom_call.1} parent=1 // pred_check_branch
      %57 = sbr.rel (0) target = $region29
    $region28: #{tpu_custom_call.1} parent=1 // pred_region
      _
    $region29: #{tpu_custom_call.1} parent=1 // pred_fallthru
      _
    // Predicated region
    $region30: #{tpu_custom_call.1} parent=1 // pred_check
      _
    $region31: #{tpu_custom_call.1} parent=1 // pred_check_branch
      %59 = sbr.rel (0) target = $region33
    $region32: #{tpu_custom_call.1} parent=1 // pred_region
      %60 = dma.done [#allocation4], 128
    $region33: #{tpu_custom_call.1} parent=1 // pred_fallthru
      _
    // Predicated region
    $region34: #{tpu_custom_call.1} parent=1 // pred_check
      _
    $region35: #{tpu_custom_call.1} parent=1 // pred_check_branch
      %62 = sbr.rel (0) target = $region37
    $region36: #{tpu_custom_call.1} parent=1 // pred_region
      %63 = dma.done [#allocation7], 4096
    $region37: #{tpu_custom_call.1} parent=1 // pred_fallthru
      _
    // Predicated region
    $region38: #{tpu_custom_call.1} parent=1 // pred_check
      _
    $region39: #{tpu_custom_call.1} parent=1 // pred_check_branch
      %65 = sbr.rel (0) target = $region41
    $region40: #{tpu_custom_call.1} parent=1 // pred_region
      %66 = dma.done [#allocation7], 4096
    $region41: #{tpu_custom_call.1} parent=1 // pred_fallthru
      _
    %v68 = vld [vmem:[#allocation3] sm:$0xff]
    %v69 = vpack.c.bf16 %v68, %v68
    %v70 = vld [vmem:[#allocation6] sm:$0xff]
    %v71 = vld [vmem:[#allocation6 + $0x8] sm:$0xff]
    %v72 = vld [vmem:[#allocation6 + $0x10] sm:$0xff]
    %v73 = vld [vmem:[#allocation6 + $0x18] sm:$0xff]
    %v74 = vld [vmem:[#allocation6 + $0x20] sm:$0xff]
    %v75 = vld [vmem:[#allocation6 + $0x28] sm:$0xff]
    %v76 = vld [vmem:[#allocation6 + $0x30] sm:$0xff]
    %v77 = vld [vmem:[#allocation6 + $0x38] sm:$0xff]
    %v78 = vld [vmem:[#allocation6 + $0x40] sm:$0xff]
    %v79 = vld [vmem:[#allocation6 + $0x48] sm:$0xff]
    %v80 = vld [vmem:[#allocation6 + $0x50] sm:$0xff]
    %v81 = vld [vmem:[#allocation6 + $0x58] sm:$0xff]
    %v82 = vld [vmem:[#allocation6 + $0x60] sm:$0xff]
    %v83 = vld [vmem:[#allocation6 + $0x68] sm:$0xff]
    %v84 = vld [vmem:[#allocation6 + $0x70] sm:$0xff]
    %v85 = vld [vmem:[#allocation6 + $0x78] sm:$0xff]
    %v86 = vld [vmem:[#allocation6 + $0x80] sm:$0xff]
    %v87 = vld [vmem:[#allocation6 + $0x88] sm:$0xff]
    %v88 = vld [vmem:[#allocation6 + $0x90] sm:$0xff]
    %v89 = vld [vmem:[#allocation6 + $0x98] sm:$0xff]
    %v90 = vld [vmem:[#allocation6 + $0xa0] sm:$0xff]
    %v91 = vld [vmem:[#allocation6 + $0xa8] sm:$0xff]
    %v92 = vld [vmem:[#allocation6 + $0xb0] sm:$0xff]
    %v93 = vld [vmem:[#allocation6 + $0xb8] sm:$0xff]
    %v94 = vld [vmem:[#allocation6 + $0xc0] sm:$0xff]
    %v95 = vld [vmem:[#allocation6 + $0xc8] sm:$0xff]
    %v96 = vld [vmem:[#allocation6 + $0xd0] sm:$0xff]
    %v97 = vld [vmem:[#allocation6 + $0xd8] sm:$0xff]
    %v98 = vld [vmem:[#allocation6 + $0xe0] sm:$0xff]
    %v99 = vld [vmem:[#allocation6 + $0xe8] sm:$0xff]
    %v100 = vld [vmem:[#allocation6 + $0xf0] sm:$0xff]
    %v101 = vld [vmem:[#allocation6 + $0xf8] sm:$0xff]
    %v102 = vld [vmem:[%s2] sm:$0xf]
    %v104 = vlaneseq
    %v105 = vshrl.u32 %v104, 7
    %v106 = vsub.s32 0, %v105
    %v107 = vrot.slane %v102, %v106
    %v108 = vlaneseq
    %v109 = vshrl.u32 %v108, 7
    %v110 = vsub.s32 1, %v109
    %v111 = vrot.slane %v102, %v110
    %v112 = vlaneseq
    %v113 = vshrl.u32 %v112, 7
    %v114 = vsub.s32 2, %v113
    %v115 = vrot.slane %v102, %v114
    %v116 = vlaneseq
    %v117 = vshrl.u32 %v116, 7
    %v118 = vsub.s32 3, %v117
    %v119 = vrot.slane %v102, %v118
    %v156 = vunpack.c.l.b16 %v70
    %v157 = vunpack.c.h.b16 %v70
    %v158 = vunpack.c.l.b16 %v71
    %v159 = vunpack.c.h.b16 %v71
    %v160 = vunpack.c.l.b16 %v72
    %v161 = vunpack.c.h.b16 %v72
    %v162 = vunpack.c.l.b16 %v73
    %v163 = vunpack.c.h.b16 %v73
    %v164 = vunpack.c.l.b16 %v74
    %v165 = vunpack.c.h.b16 %v74
    %v166 = vunpack.c.l.b16 %v75
    %v167 = vunpack.c.h.b16 %v75
    %v168 = vunpack.c.l.b16 %v76
    %v169 = vunpack.c.h.b16 %v76
    %v170 = vunpack.c.l.b16 %v77
    %v171 = vunpack.c.h.b16 %v77
    %v172 = vunpack.c.l.b16 %v78
    %v173 = vunpack.c.h.b16 %v78
    %v174 = vunpack.c.l.b16 %v79
    %v175 = vunpack.c.h.b16 %v79
    %v176 = vunpack.c.l.b16 %v80
    %v177 = vunpack.c.h.b16 %v80
    %v178 = vunpack.c.l.b16 %v81
    %v179 = vunpack.c.h.b16 %v81
    %v180 = vunpack.c.l.b16 %v82
    %v181 = vunpack.c.h.b16 %v82
    %v182 = vunpack.c.l.b16 %v83
    %v183 = vunpack.c.h.b16 %v83
    %v184 = vunpack.c.l.b16 %v84
    %v185 = vunpack.c.h.b16 %v84
    %v186 = vunpack.c.l.b16 %v85
    %v187 = vunpack.c.h.b16 %v85
    %v188 = vunpack.c.l.b16 %v86
    %v189 = vunpack.c.h.b16 %v86
    %v190 = vunpack.c.l.b16 %v87
    %v191 = vunpack.c.h.b16 %v87
    %v192 = vunpack.c.l.b16 %v88
    %v193 = vunpack.c.h.b16 %v88
    %v194 = vunpack.c.l.b16 %v89
    %v195 = vunpack.c.h.b16 %v89
    %v196 = vunpack.c.l.b16 %v90
    %v197 = vunpack.c.h.b16 %v90
    %v198 = vunpack.c.l.b16 %v91
    %v199 = vunpack.c.h.b16 %v91
    %v200 = vunpack.c.l.b16 %v92
    %v201 = vunpack.c.h.b16 %v92
    %v202 = vunpack.c.l.b16 %v93
    %v203 = vunpack.c.h.b16 %v93
    %v204 = vunpack.c.l.b16 %v94
    %v205 = vunpack.c.h.b16 %v94
    %v206 = vunpack.c.l.b16 %v95
    %v207 = vunpack.c.h.b16 %v95
    %v208 = vunpack.c.l.b16 %v96
    %v209 = vunpack.c.h.b16 %v96
    %v210 = vunpack.c.l.b16 %v97
    %v211 = vunpack.c.h.b16 %v97
    %v212 = vunpack.c.l.b16 %v98
    %v213 = vunpack.c.h.b16 %v98
    %v214 = vunpack.c.l.b16 %v99
    %v215 = vunpack.c.h.b16 %v99
    %v216 = vunpack.c.l.b16 %v100
    %v217 = vunpack.c.h.b16 %v100
    %v218 = vunpack.c.l.b16 %v101
    %v219 = vunpack.c.h.b16 %v101
    %v220 = vpack.c.b16 %v160, %v156
    %v221 = vpack.c.b16 %v161, %v157
    %v222 = vpack.c.b16 %v162, %v158
    %v223 = vpack.c.b16 %v163, %v159
    %v224 = vpack.c.b16 %v168, %v164
    %v225 = vpack.c.b16 %v169, %v165
    %v226 = vpack.c.b16 %v170, %v166
    %v227 = vpack.c.b16 %v171, %v167
    %v228 = vpack.c.b16 %v176, %v172
    %v229 = vpack.c.b16 %v177, %v173
    %v230 = vpack.c.b16 %v178, %v174
    %v231 = vpack.c.b16 %v179, %v175
    %v232 = vpack.c.b16 %v184, %v180
    %v233 = vpack.c.b16 %v185, %v181
    %v234 = vpack.c.b16 %v186, %v182
    %v235 = vpack.c.b16 %v187, %v183
    %v236 = vpack.c.b16 %v192, %v188
    %v237 = vpack.c.b16 %v193, %v189
    %v238 = vpack.c.b16 %v194, %v190
    %v239 = vpack.c.b16 %v195, %v191
    %v240 = vpack.c.b16 %v200, %v196
    %v241 = vpack.c.b16 %v201, %v197
    %v242 = vpack.c.b16 %v202, %v198
    %v243 = vpack.c.b16 %v203, %v199
    %v244 = vpack.c.b16 %v208, %v204
    %v245 = vpack.c.b16 %v209, %v205
    %v246 = vpack.c.b16 %v210, %v206
    %v247 = vpack.c.b16 %v211, %v207
    %v248 = vpack.c.b16 %v216, %v212
    %v249 = vpack.c.b16 %v217, %v213
    %v250 = vpack.c.b16 %v218, %v214
    %v251 = vpack.c.b16 %v219, %v215
    %284 = vmatprep.subr.bf16.mxu0 %v221
    %285 = vmatpush1.bf16.msra.mxu0 %v220
    %286 = vmatprep.subr.bf16.mxu0 %v225
    %287 = vmatpush1.bf16.msra.mxu0 %v224
    %288 = vmatprep.subr.bf16.mxu0 %v229
    %289 = vmatpush1.bf16.msra.mxu0 %v228
    %290 = vmatprep.subr.bf16.mxu0 %v233
    %291 = vmatpush1.bf16.msra.mxu0 %v232
    %292 = vmatprep.subr.bf16.mxu0 %v237
    %293 = vmatpush1.bf16.msra.mxu0 %v236
    %294 = vmatprep.subr.bf16.mxu0 %v241
    %295 = vmatpush1.bf16.msra.mxu0 %v240
    %296 = vmatprep.subr.bf16.mxu0 %v245
    %297 = vmatpush1.bf16.msra.mxu0 %v244
    %298 = vmatprep.subr.bf16.mxu0 %v249
    %299 = vmatpush1.bf16.msra.mxu0 %v248
    %300 = vmatprep.subr.bf16.mxu0 0
    %301 = vmatpush1.bf16.msra.mxu0 0
    %302 = vmatprep.subr.bf16.mxu0 0
    %303 = vmatpush1.bf16.msra.mxu0 0
    %304 = vmatprep.subr.bf16.mxu0 0
    %305 = vmatpush1.bf16.msra.mxu0 0
    %306 = vmatprep.subr.bf16.mxu0 0
    %307 = vmatpush1.bf16.msra.mxu0 0
    %308 = vmatprep.subr.bf16.mxu0 0
    %309 = vmatpush1.bf16.msra.mxu0 0
    %310 = vmatprep.subr.bf16.mxu0 0
    %311 = vmatpush1.bf16.msra.mxu0 0
    %312 = vmatprep.subr.bf16.mxu0 0
    %313 = vmatpush1.bf16.msra.mxu0 0
    %314 = vmatprep.subr.bf16.mxu0 0
    %315 = vmatpush1.bf16.msra.mxu0 0
    %316 = vmatprep.mubr.bf16.mxu0 0
    %317 = vmatmul.mubr.bf16.gmra.mrb[0].mxu0 %v69
    %v318 = vpop.f32.mrb[0].mxu0
    %v319 = vadd.f32 %v107, %v318
    %v320 = vpop.f32.mrb[0].mxu0
    %v321 = vadd.f32 %v111, %v320
    %v322 = vpop.f32.mrb[0].mxu0
    %v323 = vpop.f32.mrb[0].mxu0
    %324 = vdwg.mxu0
    %325 = vmatprep.subr.bf16.mxu0 %v223
    %326 = vmatpush1.bf16.msra.mxu0 %v222
    %327 = vmatprep.subr.bf16.mxu0 %v227
    %328 = vmatpush1.bf16.msra.mxu0 %v226
    %329 = vmatprep.subr.bf16.mxu0 %v231
    %330 = vmatpush1.bf16.msra.mxu0 %v230
    %331 = vmatprep.subr.bf16.mxu0 %v235
    %332 = vmatpush1.bf16.msra.mxu0 %v234
    %333 = vmatprep.subr.bf16.mxu0 %v239
    %334 = vmatpush1.bf16.msra.mxu0 %v238
    %335 = vmatprep.subr.bf16.mxu0 %v243
    %336 = vmatpush1.bf16.msra.mxu0 %v242
    %337 = vmatprep.subr.bf16.mxu0 %v247
    %338 = vmatpush1.bf16.msra.mxu0 %v246
    %339 = vmatprep.subr.bf16.mxu0 %v251
    %340 = vmatpush1.bf16.msra.mxu0 %v250
    %341 = vmatprep.subr.bf16.mxu0 0
    %342 = vmatpush1.bf16.msra.mxu0 0
    %343 = vmatprep.subr.bf16.mxu0 0
    %344 = vmatpush1.bf16.msra.mxu0 0
    %345 = vmatprep.subr.bf16.mxu0 0
    %346 = vmatpush1.bf16.msra.mxu0 0
    %347 = vmatprep.subr.bf16.mxu0 0
    %348 = vmatpush1.bf16.msra.mxu0 0
    %349 = vmatprep.subr.bf16.mxu0 0
    %350 = vmatpush1.bf16.msra.mxu0 0
    %351 = vmatprep.subr.bf16.mxu0 0
    %352 = vmatpush1.bf16.msra.mxu0 0
    %353 = vmatprep.subr.bf16.mxu0 0
    %354 = vmatpush1.bf16.msra.mxu0 0
    %355 = vmatprep.subr.bf16.mxu0 0
    %356 = vmatpush1.bf16.msra.mxu0 0
    %357 = vmatprep.mubr.bf16.mxu0 0
    %358 = vmatmul.mubr.bf16.gmra.mrb[0].mxu0 %v69
    %v359 = vpop.f32.mrb[0].mxu0
    %v360 = vadd.f32 %v115, %v359
    %v361 = vpop.f32.mrb[0].mxu0
    %v362 = vadd.f32 %v119, %v361
    %v363 = vpop.f32.mrb[0].mxu0
    %v364 = vpop.f32.mrb[0].mxu0
    %365 = vdwg.mxu0
    %vm366 = vcmp.ge.f32.partialorder %v319, 0.0
    %vm367 = vcmp.ge.f32.partialorder %v321, 0.0
    %vm368 = vcmp.ge.f32.partialorder %v360, 0.0
    %vm369 = vcmp.ge.f32.partialorder %v362, 0.0
    %v370 = vmul.f32 %v319, 0.01
    %v371 = vmul.f32 %v321, 0.01
    %v372 = vmul.f32 %v360, 0.01
    %v373 = vmul.f32 %v362, 0.01
    %v374 = vsel %vm366, %v319, %v370
    %v375 = vsel %vm367, %v321, %v371
    %v376 = vsel %vm368, %v360, %v372
    %v377 = vsel %vm369, %v362, %v373
    %v378 = vpack.c.bf16 %v374, %v374
    %v379 = vpack.c.bf16 %v375, %v375
    %v380 = vpack.c.bf16 %v376, %v376
    %v381 = vpack.c.bf16 %v377, %v377
    %v382 = vld [vmem:[#allocation8] sm:$0xf]
    %v383 = vld [vmem:[#allocation8 + $0x4] sm:$0xf]
    %v384 = vld [vmem:[#allocation8 + $0x8] sm:$0xf]
    %v385 = vld [vmem:[#allocation8 + $0xc] sm:$0xf]
    %v386 = vld [vmem:[#allocation8 + $0x10] sm:$0xf]
    %v387 = vld [vmem:[#allocation8 + $0x14] sm:$0xf]
    %v388 = vld [vmem:[#allocation8 + $0x18] sm:$0xf]
    %v389 = vld [vmem:[#allocation8 + $0x1c] sm:$0xf]
    %v390 = vld [vmem:[#allocation8 + $0x20] sm:$0xf]
    %v391 = vld [vmem:[#allocation8 + $0x24] sm:$0xf]
    %v392 = vld [vmem:[#allocation8 + $0x28] sm:$0xf]
    %v393 = vld [vmem:[#allocation8 + $0x2c] sm:$0xf]
    %v394 = vld [vmem:[#allocation8 + $0x30] sm:$0xf]
    %v395 = vld [vmem:[#allocation8 + $0x34] sm:$0xf]
    %v396 = vld [vmem:[#allocation8 + $0x38] sm:$0xf]
    %v397 = vld [vmem:[#allocation8 + $0x3c] sm:$0xf]
    %v398 = vld [vmem:[#allocation8 + $0x40] sm:$0xf]
    %v399 = vld [vmem:[#allocation8 + $0x44] sm:$0xf]
    %v400 = vld [vmem:[#allocation8 + $0x48] sm:$0xf]
    %v401 = vld [vmem:[#allocation8 + $0x4c] sm:$0xf]
    %v402 = vld [vmem:[#allocation8 + $0x50] sm:$0xf]
    %v403 = vld [vmem:[#allocation8 + $0x54] sm:$0xf]
    %v404 = vld [vmem:[#allocation8 + $0x58] sm:$0xf]
    %v405 = vld [vmem:[#allocation8 + $0x5c] sm:$0xf]
    %v406 = vld [vmem:[#allocation8 + $0x60] sm:$0xf]
    %v407 = vld [vmem:[#allocation8 + $0x64] sm:$0xf]
    %v408 = vld [vmem:[#allocation8 + $0x68] sm:$0xf]
    %v409 = vld [vmem:[#allocation8 + $0x6c] sm:$0xf]
    %v410 = vld [vmem:[#allocation8 + $0x70] sm:$0xf]
    %v411 = vld [vmem:[#allocation8 + $0x74] sm:$0xf]
    %v412 = vld [vmem:[#allocation8 + $0x78] sm:$0xf]
    %v413 = vld [vmem:[#allocation8 + $0x7c] sm:$0xf]
    %v414 = vld [vmem:[#allocation8 + $0x80] sm:$0xf]
    %v415 = vld [vmem:[#allocation8 + $0x84] sm:$0xf]
    %v416 = vld [vmem:[#allocation8 + $0x88] sm:$0xf]
    %v417 = vld [vmem:[#allocation8 + $0x8c] sm:$0xf]
    %v418 = vld [vmem:[#allocation8 + $0x90] sm:$0xf]
    %v419 = vld [vmem:[#allocation8 + $0x94] sm:$0xf]
    %v420 = vld [vmem:[#allocation8 + $0x98] sm:$0xf]
    %v421 = vld [vmem:[#allocation8 + $0x9c] sm:$0xf]
    %v422 = vld [vmem:[#allocation8 + $0xa0] sm:$0xf]
    %v423 = vld [vmem:[#allocation8 + $0xa4] sm:$0xf]
    %v424 = vld [vmem:[#allocation8 + $0xa8] sm:$0xf]
    %v425 = vld [vmem:[#allocation8 + $0xac] sm:$0xf]
    %v426 = vld [vmem:[#allocation8 + $0xb0] sm:$0xf]
    %v427 = vld [vmem:[#allocation8 + $0xb4] sm:$0xf]
    %v428 = vld [vmem:[#allocation8 + $0xb8] sm:$0xf]
    %v429 = vld [vmem:[#allocation8 + $0xbc] sm:$0xf]
    %v430 = vld [vmem:[#allocation8 + $0xc0] sm:$0xf]
    %v431 = vld [vmem:[#allocation8 + $0xc4] sm:$0xf]
    %v432 = vld [vmem:[#allocation8 + $0xc8] sm:$0xf]
    %v433 = vld [vmem:[#allocation8 + $0xcc] sm:$0xf]
    %v434 = vld [vmem:[#allocation8 + $0xd0] sm:$0xf]
    %v435 = vld [vmem:[#allocation8 + $0xd4] sm:$0xf]
    %v436 = vld [vmem:[#allocation8 + $0xd8] sm:$0xf]
    %v437 = vld [vmem:[#allocation8 + $0xdc] sm:$0xf]
    %v438 = vld [vmem:[#allocation8 + $0xe0] sm:$0xf]
    %v439 = vld [vmem:[#allocation8 + $0xe4] sm:$0xf]
    %v440 = vld [vmem:[#allocation8 + $0xe8] sm:$0xf]
    %v441 = vld [vmem:[#allocation8 + $0xec] sm:$0xf]
    %v442 = vld [vmem:[#allocation8 + $0xf0] sm:$0xf]
    %v443 = vld [vmem:[#allocation8 + $0xf4] sm:$0xf]
    %v444 = vld [vmem:[#allocation8 + $0xf8] sm:$0xf]
    %v445 = vld [vmem:[#allocation8 + $0xfc] sm:$0xf]
    %v446 = vld [vmem:[%s4] sm:$0x1]
    %v448 = vlaneseq
    %v449 = vshrl.u32 %v448, 7
    %v450 = vsub.s32 0, %v449
    %v451 = vrot.slane %v446, %v450
    %v517 = vunpack.c.l.b16 %v382
    %v518 = vunpack.c.l.b16 %v383
    %v519 = vunpack.c.l.b16 %v384
    %v520 = vunpack.c.l.b16 %v385
    %v521 = vunpack.c.l.b16 %v386
    %v522 = vunpack.c.l.b16 %v387
    %v523 = vunpack.c.l.b16 %v388
    %v524 = vunpack.c.l.b16 %v389
    %v525 = vunpack.c.l.b16 %v390
    %v526 = vunpack.c.l.b16 %v391
    %v527 = vunpack.c.l.b16 %v392
    %v528 = vunpack.c.l.b16 %v393
    %v529 = vunpack.c.l.b16 %v394
    %v530 = vunpack.c.l.b16 %v395
    %v531 = vunpack.c.l.b16 %v396
    %v532 = vunpack.c.l.b16 %v397
    %v533 = vunpack.c.l.b16 %v398
    %v534 = vunpack.c.l.b16 %v399
    %v535 = vunpack.c.l.b16 %v400
    %v536 = vunpack.c.l.b16 %v401
    %v537 = vunpack.c.l.b16 %v402
    %v538 = vunpack.c.l.b16 %v403
    %v539 = vunpack.c.l.b16 %v404
    %v540 = vunpack.c.l.b16 %v405
    %v541 = vunpack.c.l.b16 %v406
    %v542 = vunpack.c.l.b16 %v407
    %v543 = vunpack.c.l.b16 %v408
    %v544 = vunpack.c.l.b16 %v409
    %v545 = vunpack.c.l.b16 %v410
    %v546 = vunpack.c.l.b16 %v411
    %v547 = vunpack.c.l.b16 %v412
    %v548 = vunpack.c.l.b16 %v413
    %v549 = vunpack.c.l.b16 %v414
    %v550 = vunpack.c.l.b16 %v415
    %v551 = vunpack.c.l.b16 %v416
    %v552 = vunpack.c.l.b16 %v417
    %v553 = vunpack.c.l.b16 %v418
    %v554 = vunpack.c.l.b16 %v419
    %v555 = vunpack.c.l.b16 %v420
    %v556 = vunpack.c.l.b16 %v421
    %v557 = vunpack.c.l.b16 %v422
    %v558 = vunpack.c.l.b16 %v423
    %v559 = vunpack.c.l.b16 %v424
    %v560 = vunpack.c.l.b16 %v425
    %v561 = vunpack.c.l.b16 %v426
    %v562 = vunpack.c.l.b16 %v427
    %v563 = vunpack.c.l.b16 %v428
    %v564 = vunpack.c.l.b16 %v429
    %v565 = vunpack.c.l.b16 %v430
    %v566 = vunpack.c.l.b16 %v431
    %v567 = vunpack.c.l.b16 %v432
    %v568 = vunpack.c.l.b16 %v433
    %v569 = vunpack.c.l.b16 %v434
    %v570 = vunpack.c.l.b16 %v435
    %v571 = vunpack.c.l.b16 %v436
    %v572 = vunpack.c.l.b16 %v437
    %v573 = vunpack.c.l.b16 %v438
    %v574 = vunpack.c.l.b16 %v439
    %v575 = vunpack.c.l.b16 %v440
    %v576 = vunpack.c.l.b16 %v441
    %v577 = vunpack.c.l.b16 %v442
    %v578 = vunpack.c.l.b16 %v443
    %v579 = vunpack.c.l.b16 %v444
    %v580 = vunpack.c.l.b16 %v445
    %v581 = vpack.c.b16 %v518, %v517
    %v582 = vpack.c.b16 %v520, %v519
    %v583 = vpack.c.b16 %v522, %v521
    %v584 = vpack.c.b16 %v524, %v523
    %v585 = vpack.c.b16 %v526, %v525
    %v586 = vpack.c.b16 %v528, %v527
    %v587 = vpack.c.b16 %v530, %v529
    %v588 = vpack.c.b16 %v532, %v531
    %v589 = vpack.c.b16 %v534, %v533
    %v590 = vpack.c.b16 %v536, %v535
    %v591 = vpack.c.b16 %v538, %v537
    %v592 = vpack.c.b16 %v540, %v539
    %v593 = vpack.c.b16 %v542, %v541
    %v594 = vpack.c.b16 %v544, %v543
    %v595 = vpack.c.b16 %v546, %v545
    %v596 = vpack.c.b16 %v548, %v547
    %v597 = vpack.c.b16 %v550, %v549
    %v598 = vpack.c.b16 %v552, %v551
    %v599 = vpack.c.b16 %v554, %v553
    %v600 = vpack.c.b16 %v556, %v555
    %v601 = vpack.c.b16 %v558, %v557
    %v602 = vpack.c.b16 %v560, %v559
    %v603 = vpack.c.b16 %v562, %v561
    %v604 = vpack.c.b16 %v564, %v563
    %v605 = vpack.c.b16 %v566, %v565
    %v606 = vpack.c.b16 %v568, %v567
    %v607 = vpack.c.b16 %v570, %v569
    %v608 = vpack.c.b16 %v572, %v571
    %v609 = vpack.c.b16 %v574, %v573
    %v610 = vpack.c.b16 %v576, %v575
    %v611 = vpack.c.b16 %v578, %v577
    %v612 = vpack.c.b16 %v580, %v579
    %645 = vmatprep.subr.bf16.mxu0 0
    %646 = vmatpush1.bf16.msra.mxu0 %v581
    %647 = vmatprep.subr.bf16.mxu0 0
    %648 = vmatpush1.bf16.msra.mxu0 %v582
    %649 = vmatprep.subr.bf16.mxu0 0
    %650 = vmatpush1.bf16.msra.mxu0 %v583
    %651 = vmatprep.subr.bf16.mxu0 0
    %652 = vmatpush1.bf16.msra.mxu0 %v584
    %653 = vmatprep.subr.bf16.mxu0 0
    %654 = vmatpush1.bf16.msra.mxu0 %v585
    %655 = vmatprep.subr.bf16.mxu0 0
    %656 = vmatpush1.bf16.msra.mxu0 %v586
    %657 = vmatprep.subr.bf16.mxu0 0
    %658 = vmatpush1.bf16.msra.mxu0 %v587
    %659 = vmatprep.subr.bf16.mxu0 0
    %660 = vmatpush1.bf16.msra.mxu0 %v588
    %661 = vmatprep.subr.bf16.mxu0 0
    %662 = vmatpush1.bf16.msra.mxu0 %v589
    %663 = vmatprep.subr.bf16.mxu0 0
    %664 = vmatpush1.bf16.msra.mxu0 %v590
    %665 = vmatprep.subr.bf16.mxu0 0
    %666 = vmatpush1.bf16.msra.mxu0 %v591
    %667 = vmatprep.subr.bf16.mxu0 0
    %668 = vmatpush1.bf16.msra.mxu0 %v592
    %669 = vmatprep.subr.bf16.mxu0 0
    %670 = vmatpush1.bf16.msra.mxu0 %v593
    %671 = vmatprep.subr.bf16.mxu0 0
    %672 = vmatpush1.bf16.msra.mxu0 %v594
    %673 = vmatprep.subr.bf16.mxu0 0
    %674 = vmatpush1.bf16.msra.mxu0 %v595
    %675 = vmatprep.subr.bf16.mxu0 0
    %676 = vmatpush1.bf16.msra.mxu0 %v596
    %677 = vmatprep.mubr.bf16.mxu0 %v379
    %678 = vmatmul.mubr.bf16.gmra.mrb[0].mxu0 %v378
    %v679 = vpop.f32.mrb[0].mxu0
    %v680 = vadd.f32 %v451, %v679
    %v681 = vpop.f32.mrb[0].mxu0
    %v682 = vpop.f32.mrb[0].mxu0
    %v683 = vpop.f32.mrb[0].mxu0
    %684 = vdwg.mxu0
    %685 = vmatprep.subr.bf16.mxu0 0
    %686 = vmatpush1.bf16.msra.mxu0 %v597
    %687 = vmatprep.subr.bf16.mxu0 0
    %688 = vmatpush1.bf16.msra.mxu0 %v598
    %689 = vmatprep.subr.bf16.mxu0 0
    %690 = vmatpush1.bf16.msra.mxu0 %v599
    %691 = vmatprep.subr.bf16.mxu0 0
    %692 = vmatpush1.bf16.msra.mxu0 %v600
    %693 = vmatprep.subr.bf16.mxu0 0
    %694 = vmatpush1.bf16.msra.mxu0 %v601
    %695 = vmatprep.subr.bf16.mxu0 0
    %696 = vmatpush1.bf16.msra.mxu0 %v602
    %697 = vmatprep.subr.bf16.mxu0 0
    %698 = vmatpush1.bf16.msra.mxu0 %v603
    %699 = vmatprep.subr.bf16.mxu0 0
    %700 = vmatpush1.bf16.msra.mxu0 %v604
    %701 = vmatprep.subr.bf16.mxu0 0
    %702 = vmatpush1.bf16.msra.mxu0 %v605
    %703 = vmatprep.subr.bf16.mxu0 0
    %704 = vmatpush1.bf16.msra.mxu0 %v606
    %705 = vmatprep.subr.bf16.mxu0 0
    %706 = vmatpush1.bf16.msra.mxu0 %v607
    %707 = vmatprep.subr.bf16.mxu0 0
    %708 = vmatpush1.bf16.msra.mxu0 %v608
    %709 = vmatprep.subr.bf16.mxu0 0
    %710 = vmatpush1.bf16.msra.mxu0 %v609
    %711 = vmatprep.subr.bf16.mxu0 0
    %712 = vmatpush1.bf16.msra.mxu0 %v610
    %713 = vmatprep.subr.bf16.mxu0 0
    %714 = vmatpush1.bf16.msra.mxu0 %v611
    %715 = vmatprep.subr.bf16.mxu0 0
    %716 = vmatpush1.bf16.msra.mxu0 %v612
    %717 = vmatprep.mubr.bf16.mxu0 %v381
    %718 = vmatmul.mubr.bf16.gmra.mrb[0].mxu0 %v380
    %v719 = vpop.f32.mrb[0].mxu0
    %v720 = vadd.f32 %v680, %v719
    %v721 = vpop.f32.mrb[0].mxu0
    %v722 = vpop.f32.mrb[0].mxu0
    %v723 = vpop.f32.mrb[0].mxu0
    %724 = vdwg.mxu0
    %vm725 = vcmp.ge.f32.partialorder %v720, 0.0
    %v726 = vmul.f32 %v720, 0.01
    %v727 = vsel %vm725, %v720, %v726
    %v728 = vld [vmem:[%s5] sm:$0x1]
    %v730 = vlaneseq
    %v731 = vshrl.u32 %v730, 7
    %v732 = vsub.s32 0, %v731
    %v733 = vrot.slane %v728, %v732
    %v735 = vmul.f32 %v727, %v733
    %736 = vadd.xlane.f32.xlu0 %v735
    %v737 = vpop.xlane.xlu0 %736
    %s738 = sld [smem:[#allocation2]]
    %v739 = vstv %s738
    %v740 = vadd.f32 %v737, %v739
    %v741 = vsub.f32 0.0, %v740
    %v742 = vmul.f32 %v741, 1.442695
    %v743 = vpow.pop %v742
    %v744 = vadd.f32 %v743, 1.0
    %v745 = vrcp.pop %v744
    %746 = vxpose.xlu0.b32.start [1/16] %v745, 128
    %747 = vxpose.xlu0.b32.cont [2/16] 0.0, 128
    %748 = vxpose.xlu0.b32.cont [3/16] 0.0, 128
    %749 = vxpose.xlu0.b32.cont [4/16] 0.0, 128
    %750 = vxpose.xlu0.b32.cont [5/16] 0.0, 128
    %751 = vxpose.xlu0.b32.cont [6/16] 0.0, 128
    %752 = vxpose.xlu0.b32.cont [7/16] 0.0, 128
    %753 = vxpose.xlu0.b32.cont [8/16] 0.0, 128
    %754 = vxpose.xlu0.b32.cont [9/16] 0.0, 128
    %755 = vxpose.xlu0.b32.cont [10/16] 0.0, 128
    %756 = vxpose.xlu0.b32.cont [11/16] 0.0, 128
    %757 = vxpose.xlu0.b32.cont [12/16] 0.0, 128
    %758 = vxpose.xlu0.b32.cont [13/16] 0.0, 128
    %759 = vxpose.xlu0.b32.cont [14/16] 0.0, 128
    %760 = vxpose.xlu0.b32.cont [15/16] 0.0, 128
    %761 = vxpose.xlu0.b32.end [16/16] 0.0, 128
    %v762 = vpop.trf.xlu0
    %v763 = vpop.trf.xlu0
    %v764 = vpop.trf.xlu0
    %v765 = vpop.trf.xlu0
    %v766 = vpop.trf.xlu0
    %v767 = vpop.trf.xlu0
    %v768 = vpop.trf.xlu0
    %v769 = vpop.trf.xlu0
    %v770 = vpop.trf.xlu0
    %v771 = vpop.trf.xlu0
    %v772 = vpop.trf.xlu0
    %v773 = vpop.trf.xlu0
    %v774 = vpop.trf.xlu0
    %v775 = vpop.trf.xlu0
    %v776 = vpop.trf.xlu0
    %v777 = vpop.trf.xlu0
    %vm778 = vcmask 57344
    %779 = vst.msk [vmem:[#allocation9] sm:$0x1] %vm778, %v762
    // Predicated region
    $region42: #{tpu_custom_call.1} parent=1 // pred_check
      _
    $region43: #{tpu_custom_call.1} parent=1 // pred_check_branch
      %781 = sbr.rel (0) target = $region45
    $region44: #{tpu_custom_call.1} parent=1 // pred_region
      %s783 = ssub.s32 16, 16
      %784 = vsyncadd [#allocation5], %s783
      %s786 = sshll.u32 [#allocation9], 4
      %s787 = int_to_ptr.vmem [resolvable:$true] %s786
      %789 = dma.vmem_to_hbm [thread:$0]  %s787, 16, %s7, [#allocation5]
    $region45: #{tpu_custom_call.1} parent=1 // pred_fallthru
      _
    // Predicated region
    $region46: #{tpu_custom_call.1} parent=1 // pred_check
      _
    $region47: #{tpu_custom_call.1} parent=1 // pred_check_branch
      %791 = sbr.rel (0) target = $region49
    $region48: #{tpu_custom_call.1} parent=1 // pred_region
      %792 = dma.done [#allocation5], 16
    $region49: #{tpu_custom_call.1} parent=1 // pred_fallthru
      _
    %793 = vsyncpa [#allocation4], 1
    %794 = vsyncpa [#allocation7], 1
    %795 = vsyncpa [#allocation5], 1

// kernel: tpu_custom_call.1
$region0: #{tpu_custom_call.1}
  #allocation0 [shape = 'u32[]', space=smem, size = 0x4, offset = 0x4, fixed_abs, tag = 'smem constant byte address 0x4 - core index']
  #allocation1 [shape = 'u32[144,128]{1,0:T(1,128)}', space=vmem, size = 0x12000, scoped, tag = 'internal scratch']
  #allocation2 [shape = 'f32[1]{0:T(128)S(6)}', space=smem, size = 0x200, scoped, tag = 'scoped memory for tpu_custom_call.1']
  %s0 = inlined_call_operand.hbm [shape: f32[8,128], index: 0, kind: input, shape index: {}]
  %s1 = inlined_call_operand.hbm [shape: bf16[128,512], index: 1, kind: input, shape index: {}]
  %s2 = inlined_call_operand.vmem [shape: f32[1,512], index: 2, kind: input, shape index: {}]
  %s3 = inlined_call_operand.hbm [shape: bf16[512,128], index: 3, kind: input, shape index: {}]
  %s4 = inlined_call_operand.vmem [shape: f32[1,128], index: 4, kind: input, shape index: {}]
  %s5 = inlined_call_operand.vmem [shape: f32[1,128], index: 5, kind: input, shape index: {}]
  %s6 = inlined_call_operand.<no memory space> [shape: f32[1], index: 6, kind: input, shape index: {}]
  %s7 = inlined_call_operand.hbm [shape: f32[1,1,8], index: 7, kind: output, shape index: {}]
  %s8 = sld [smem:[#allocation0]]
  $region50: #{tpu_custom_call.1} parent=0
    _
  %s10 = ssub.s32 1, %s8
  %s11 = scalar_select 0, %s10, %s8
  %12 = sst [smem:[#allocation2]] %s6
  $region1: #{tpu_custom_call.1} parent=0
    #allocation3 [shape = 'u8[4096]{0}', space=vmem, size = 0x1000, scoped, tag = 'input window, operand 0, single buffered']
    #allocation4 [shape = 's32[1]{0}', space=sflag, size = 0x4, scoped, tag = 'scoped memory for tpu_custom_call.1']
    #allocation5 [shape = 's32[1]{0}', space=sflag, size = 0x4, scoped, tag = 'scoped memory for tpu_custom_call.1']
    #allocation6 [shape = 'u8[131072]{0}', space=vmem, size = 0x20000, scoped, tag = 'input window, operand 1, single buffered']
    #allocation7 [shape = 's32[1]{0}', space=sflag, size = 0x4, scoped, tag = 'scoped memory for tpu_custom_call.1']
    #allocation8 [shape = 'u8[131072]{0}', space=vmem, size = 0x20000, scoped, tag = 'input window, operand 3, single buffered']
    #allocation9 [shape = 'u8[512]{0}', space=vmem, size = 0x400, scoped, tag = 'output window, operand 0, single buffered']
    %13 = vsyncpa [#allocation4], 0
    %14 = vsyncpa [#allocation7], 0
    %15 = vsyncpa [#allocation5], 0
    // Predicated region
    $region2: #{tpu_custom_call.1} parent=1 // pred_check
      _
    $region3: #{tpu_custom_call.1} parent=1 // pred_check_branch
      %17 = sbr.rel (0) target = $region5
    $region4: #{tpu_custom_call.1} parent=1 // pred_region
      %s19 = ssub.s32 128, 128
      %20 = vsyncadd [#allocation4], %s19
      %s22 = sshll.u32 [#allocation3], 4
      %s23 = int_to_ptr.vmem [resolvable:$true] %s22
      %25 = dma.hbm_to_vmem [thread:$0]  %s0, 128, %s23, [#allocation4]
    $region5: #{tpu_custom_call.1} parent=1 // pred_fallthru
      _
    // Predicated region
    $region6: #{tpu_custom_call.1} parent=1 // pred_check
      _
    $region7: #{tpu_custom_call.1} parent=1 // pred_check_branch
      %27 = sbr.rel (0) target = $region9
    $region8: #{tpu_custom_call.1} parent=1 // pred_region
      %s29 = ssub.s32 4096, 4096
      %30 = vsyncadd [#allocation7], %s29
      %s31 = sshll.u32 [#allocation6], 4
      %s32 = int_to_ptr.vmem [resolvable:$true] %s31
      %37 = dma.hbm_to_vmem [thread:$0]  %s1, 4096, %s32, [#allocation7], 256, 256, 16
    $region9: #{tpu_custom_call.1} parent=1 // pred_fallthru
      _
    // Predicated region
    $region10: #{tpu_custom_call.1} parent=1 // pred_check
      _
    $region11: #{tpu_custom_call.1} parent=1 // pred_check_branch
      %39 = sbr.rel (0) target = $region13
    $region12: #{tpu_custom_call.1} parent=1 // pred_region
      _
    $region13: #{tpu_custom_call.1} parent=1 // pred_fallthru
      _
    // Predicated region
    $region14: #{tpu_custom_call.1} parent=1 // pred_check
      _
    $region15: #{tpu_custom_call.1} parent=1 // pred_check_branch
      %41 = sbr.rel (0) target = $region17
    $region16: #{tpu_custom_call.1} parent=1 // pred_region
      %s43 = ssub.s32 4096, 4096
      %44 = vsyncadd [#allocation7], %s43
      %s45 = sshll.u32 [#allocation8], 4
      %s46 = int_to_ptr.vmem [resolvable:$true] %s45
      %51 = dma.hbm_to_vmem [thread:$0]  %s3, 4096, %s46, [#allocation7], 64, 64, 4
    $region17: #{tpu_custom_call.1} parent=1 // pred_fallthru
      _
    // Predicated region
    $region18: #{tpu_custom_call.1} parent=1 // pred_check
      _
    $region19: #{tpu_custom_call.1} parent=1 // pred_check_branch
      %53 = sbr.rel (0) target = $region21
    $region20: #{tpu_custom_call.1} parent=1 // pred_region
      _
    $region21: #{tpu_custom_call.1} parent=1 // pred_fallthru
      _
    // Predicated region
    $region22: #{tpu_custom_call.1} parent=1 // pred_check
      _
    $region23: #{tpu_custom_call.1} parent=1 // pred_check_branch
      %55 = sbr.rel (0) target = $region25
    $region24: #{tpu_custom_call.1} parent=1 // pred_region
      _
    $region25: #{tpu_custom_call.1} parent=1 // pred_fallthru
      _
    // Predicated region
    $region26: #{tpu_custom_call.1} parent=1 // pred_check
      _
    $region27: #{tpu_custom_call.1} parent=1 // pred_check_branch
      %57 = sbr.rel (0) target = $region29
    $region28: #{tpu_custom_call.1} parent=1 // pred_region
      _
    $region29: #{tpu_custom_call.1} parent=1 // pred_fallthru
      _
    // Predicated region
    $region30: #{tpu_custom_call.1} parent=1 // pred_check
      _
    $region31: #{tpu_custom_call.1} parent=1 // pred_check_branch
      %59 = sbr.rel (0) target = $region33
    $region32: #{tpu_custom_call.1} parent=1 // pred_region
      %60 = dma.done [#allocation4], 128
    $region33: #{tpu_custom_call.1} parent=1 // pred_fallthru
      _
    // Predicated region
    $region34: #{tpu_custom_call.1} parent=1 // pred_check
      _
    $region35: #{tpu_custom_call.1} parent=1 // pred_check_branch
      %62 = sbr.rel (0) target = $region37
    $region36: #{tpu_custom_call.1} parent=1 // pred_region
      %63 = dma.done [#allocation7], 4096
    $region37: #{tpu_custom_call.1} parent=1 // pred_fallthru
      _
    // Predicated region
    $region38: #{tpu_custom_call.1} parent=1 // pred_check
      _
    $region39: #{tpu_custom_call.1} parent=1 // pred_check_branch
      %65 = sbr.rel (0) target = $region41
    $region40: #{tpu_custom_call.1} parent=1 // pred_region
      %66 = dma.done [#allocation7], 4096
    $region41: #{tpu_custom_call.1} parent=1 // pred_fallthru
      _
    %v68 = vld [vmem:[#allocation3] sm:$0xff]
    %v69 = vpack.c.bf16 %v68, %v68
    %v70 = vld [vmem:[#allocation6] sm:$0xff]
    %v71 = vld [vmem:[#allocation6 + $0x8] sm:$0xff]
    %v72 = vld [vmem:[#allocation6 + $0x10] sm:$0xff]
    %v73 = vld [vmem:[#allocation6 + $0x18] sm:$0xff]
    %v74 = vld [vmem:[#allocation6 + $0x20] sm:$0xff]
    %v75 = vld [vmem:[#allocation6 + $0x28] sm:$0xff]
    %v76 = vld [vmem:[#allocation6 + $0x30] sm:$0xff]
    %v77 = vld [vmem:[#allocation6 + $0x38] sm:$0xff]
    %v78 = vld [vmem:[#allocation6 + $0x40] sm:$0xff]
    %v79 = vld [vmem:[#allocation6 + $0x48] sm:$0xff]
    %v80 = vld [vmem:[#allocation6 + $0x50] sm:$0xff]
    %v81 = vld [vmem:[#allocation6 + $0x58] sm:$0xff]
    %v82 = vld [vmem:[#allocation6 + $0x60] sm:$0xff]
    %v83 = vld [vmem:[#allocation6 + $0x68] sm:$0xff]
    %v84 = vld [vmem:[#allocation6 + $0x70] sm:$0xff]
    %v85 = vld [vmem:[#allocation6 + $0x78] sm:$0xff]
    %v86 = vld [vmem:[#allocation6 + $0x80] sm:$0xff]
    %v87 = vld [vmem:[#allocation6 + $0x88] sm:$0xff]
    %v88 = vld [vmem:[#allocation6 + $0x90] sm:$0xff]
    %v89 = vld [vmem:[#allocation6 + $0x98] sm:$0xff]
    %v90 = vld [vmem:[#allocation6 + $0xa0] sm:$0xff]
    %v91 = vld [vmem:[#allocation6 + $0xa8] sm:$0xff]
    %v92 = vld [vmem:[#allocation6 + $0xb0] sm:$0xff]
    %v93 = vld [vmem:[#allocation6 + $0xb8] sm:$0xff]
    %v94 = vld [vmem:[#allocation6 + $0xc0] sm:$0xff]
    %v95 = vld [vmem:[#allocation6 + $0xc8] sm:$0xff]
    %v96 = vld [vmem:[#allocation6 + $0xd0] sm:$0xff]
    %v97 = vld [vmem:[#allocation6 + $0xd8] sm:$0xff]
    %v98 = vld [vmem:[#allocation6 + $0xe0] sm:$0xff]
    %v99 = vld [vmem:[#allocation6 + $0xe8] sm:$0xff]
    %v100 = vld [vmem:[#allocation6 + $0xf0] sm:$0xff]
    %v101 = vld [vmem:[#allocation6 + $0xf8] sm:$0xff]
    %v102 = vld [vmem:[%s2] sm:$0xf]
    %v104 = vlaneseq
    %v105 = vshrl.u32 %v104, 7
    %v106 = vsub.s32 0, %v105
    %v107 = vrot.slane %v102, %v106
    %v108 = vlaneseq
    %v109 = vshrl.u32 %v108, 7
    %v110 = vsub.s32 1, %v109
    %v111 = vrot.slane %v102, %v110
    %v112 = vlaneseq
    %v113 = vshrl.u32 %v112, 7
    %v114 = vsub.s32 2, %v113
    %v115 = vrot.slane %v102, %v114
    %v116 = vlaneseq
    %v117 = vshrl.u32 %v116, 7
    %v118 = vsub.s32 3, %v117
    %v119 = vrot.slane %v102, %v118
    %v156 = vunpack.c.l.b16 %v70
    %v157 = vunpack.c.h.b16 %v70
    %v158 = vunpack.c.l.b16 %v71
    %v159 = vunpack.c.h.b16 %v71
    %v160 = vunpack.c.l.b16 %v72
    %v161 = vunpack.c.h.b16 %v72
    %v162 = vunpack.c.l.b16 %v73
    %v163 = vunpack.c.h.b16 %v73
    %v164 = vunpack.c.l.b16 %v74
    %v165 = vunpack.c.h.b16 %v74
    %v166 = vunpack.c.l.b16 %v75
    %v167 = vunpack.c.h.b16 %v75
    %v168 = vunpack.c.l.b16 %v76
    %v169 = vunpack.c.h.b16 %v76
    %v170 = vunpack.c.l.b16 %v77
    %v171 = vunpack.c.h.b16 %v77
    %v172 = vunpack.c.l.b16 %v78
    %v173 = vunpack.c.h.b16 %v78
    %v174 = vunpack.c.l.b16 %v79
    %v175 = vunpack.c.h.b16 %v79
    %v176 = vunpack.c.l.b16 %v80
    %v177 = vunpack.c.h.b16 %v80
    %v178 = vunpack.c.l.b16 %v81
    %v179 = vunpack.c.h.b16 %v81
    %v180 = vunpack.c.l.b16 %v82
    %v181 = vunpack.c.h.b16 %v82
    %v182 = vunpack.c.l.b16 %v83
    %v183 = vunpack.c.h.b16 %v83
    %v184 = vunpack.c.l.b16 %v84
    %v185 = vunpack.c.h.b16 %v84
    %v186 = vunpack.c.l.b16 %v85
    %v187 = vunpack.c.h.b16 %v85
    %v188 = vunpack.c.l.b16 %v86
    %v189 = vunpack.c.h.b16 %v86
    %v190 = vunpack.c.l.b16 %v87
    %v191 = vunpack.c.h.b16 %v87
    %v192 = vunpack.c.l.b16 %v88
    %v193 = vunpack.c.h.b16 %v88
    %v194 = vunpack.c.l.b16 %v89
    %v195 = vunpack.c.h.b16 %v89
    %v196 = vunpack.c.l.b16 %v90
    %v197 = vunpack.c.h.b16 %v90
    %v198 = vunpack.c.l.b16 %v91
    %v199 = vunpack.c.h.b16 %v91
    %v200 = vunpack.c.l.b16 %v92
    %v201 = vunpack.c.h.b16 %v92
    %v202 = vunpack.c.l.b16 %v93
    %v203 = vunpack.c.h.b16 %v93
    %v204 = vunpack.c.l.b16 %v94
    %v205 = vunpack.c.h.b16 %v94
    %v206 = vunpack.c.l.b16 %v95
    %v207 = vunpack.c.h.b16 %v95
    %v208 = vunpack.c.l.b16 %v96
    %v209 = vunpack.c.h.b16 %v96
    %v210 = vunpack.c.l.b16 %v97
    %v211 = vunpack.c.h.b16 %v97
    %v212 = vunpack.c.l.b16 %v98
    %v213 = vunpack.c.h.b16 %v98
    %v214 = vunpack.c.l.b16 %v99
    %v215 = vunpack.c.h.b16 %v99
    %v216 = vunpack.c.l.b16 %v100
    %v217 = vunpack.c.h.b16 %v100
    %v218 = vunpack.c.l.b16 %v101
    %v219 = vunpack.c.h.b16 %v101
    %v220 = vpack.c.b16 %v160, %v156
    %v221 = vpack.c.b16 %v161, %v157
    %v222 = vpack.c.b16 %v162, %v158
    %v223 = vpack.c.b16 %v163, %v159
    %v224 = vpack.c.b16 %v168, %v164
    %v225 = vpack.c.b16 %v169, %v165
    %v226 = vpack.c.b16 %v170, %v166
    %v227 = vpack.c.b16 %v171, %v167
    %v228 = vpack.c.b16 %v176, %v172
    %v229 = vpack.c.b16 %v177, %v173
    %v230 = vpack.c.b16 %v178, %v174
    %v231 = vpack.c.b16 %v179, %v175
    %v232 = vpack.c.b16 %v184, %v180
    %v233 = vpack.c.b16 %v185, %v181
    %v234 = vpack.c.b16 %v186, %v182
    %v235 = vpack.c.b16 %v187, %v183
    %v236 = vpack.c.b16 %v192, %v188
    %v237 = vpack.c.b16 %v193, %v189
    %v238 = vpack.c.b16 %v194, %v190
    %v239 = vpack.c.b16 %v195, %v191
    %v240 = vpack.c.b16 %v200, %v196
    %v241 = vpack.c.b16 %v201, %v197
    %v242 = vpack.c.b16 %v202, %v198
    %v243 = vpack.c.b16 %v203, %v199
    %v244 = vpack.c.b16 %v208, %v204
    %v245 = vpack.c.b16 %v209, %v205
    %v246 = vpack.c.b16 %v210, %v206
    %v247 = vpack.c.b16 %v211, %v207
    %v248 = vpack.c.b16 %v216, %v212
    %v249 = vpack.c.b16 %v217, %v213
    %v250 = vpack.c.b16 %v218, %v214
    %v251 = vpack.c.b16 %v219, %v215
    %284 = vmatprep.subr.bf16.mxu0 %v221
    %285 = vmatpush1.bf16.msra.mxu0 %v220
    %286 = vmatprep.subr.bf16.mxu0 %v225
    %287 = vmatpush1.bf16.msra.mxu0 %v224
    %288 = vmatprep.subr.bf16.mxu0 %v229
    %289 = vmatpush1.bf16.msra.mxu0 %v228
    %290 = vmatprep.subr.bf16.mxu0 %v233
    %291 = vmatpush1.bf16.msra.mxu0 %v232
    %292 = vmatprep.subr.bf16.mxu0 %v237
    %293 = vmatpush1.bf16.msra.mxu0 %v236
    %294 = vmatprep.subr.bf16.mxu0 %v241
    %295 = vmatpush1.bf16.msra.mxu0 %v240
    %296 = vmatprep.subr.bf16.mxu0 %v245
    %297 = vmatpush1.bf16.msra.mxu0 %v244
    %298 = vmatprep.subr.bf16.mxu0 %v249
    %299 = vmatpush1.bf16.msra.mxu0 %v248
    %300 = vmatprep.subr.bf16.mxu0 0
    %301 = vmatpush1.bf16.msra.mxu0 0
    %302 = vmatprep.subr.bf16.mxu0 0
    %303 = vmatpush1.bf16.msra.mxu0 0
    %304 = vmatprep.subr.bf16.mxu0 0
    %305 = vmatpush1.bf16.msra.mxu0 0
    %306 = vmatprep.subr.bf16.mxu0 0
    %307 = vmatpush1.bf16.msra.mxu0 0
    %308 = vmatprep.subr.bf16.mxu0 0
    %309 = vmatpush1.bf16.msra.mxu0 0
    %310 = vmatprep.subr.bf16.mxu0 0
    %311 = vmatpush1.bf16.msra.mxu0 0
    %312 = vmatprep.subr.bf16.mxu0 0
    %313 = vmatpush1.bf16.msra.mxu0 0
    %314 = vmatprep.subr.bf16.mxu0 0
    %315 = vmatpush1.bf16.msra.mxu0 0
    %316 = vmatprep.mubr.bf16.mxu0 0
    %317 = vmatmul.mubr.bf16.gmra.mrb[0].mxu0 %v69
    %v318 = vpop.f32.mrb[0].mxu0
    %v319 = vadd.f32 %v107, %v318
    %v320 = vpop.f32.mrb[0].mxu0
    %v321 = vadd.f32 %v111, %v320
    %v322 = vpop.f32.mrb[0].mxu0
    %v323 = vpop.f32.mrb[0].mxu0
    %324 = vdwg.mxu0
    %325 = vmatprep.subr.bf16.mxu0 %v223
    %326 = vmatpush1.bf16.msra.mxu0 %v222
    %327 = vmatprep.subr.bf16.mxu0 %v227
    %328 = vmatpush1.bf16.msra.mxu0 %v226
    %329 = vmatprep.subr.bf16.mxu0 %v231
    %330 = vmatpush1.bf16.msra.mxu0 %v230
    %331 = vmatprep.subr.bf16.mxu0 %v235
    %332 = vmatpush1.bf16.msra.mxu0 %v234
    %333 = vmatprep.subr.bf16.mxu0 %v239
    %334 = vmatpush1.bf16.msra.mxu0 %v238
    %335 = vmatprep.subr.bf16.mxu0 %v243
    %336 = vmatpush1.bf16.msra.mxu0 %v242
    %337 = vmatprep.subr.bf16.mxu0 %v247
    %338 = vmatpush1.bf16.msra.mxu0 %v246
    %339 = vmatprep.subr.bf16.mxu0 %v251
    %340 = vmatpush1.bf16.msra.mxu0 %v250
    %341 = vmatprep.subr.bf16.mxu0 0
    %342 = vmatpush1.bf16.msra.mxu0 0
    %343 = vmatprep.subr.bf16.mxu0 0
    %344 = vmatpush1.bf16.msra.mxu0 0
    %345 = vmatprep.subr.bf16.mxu0 0
    %346 = vmatpush1.bf16.msra.mxu0 0
    %347 = vmatprep.subr.bf16.mxu0 0
    %348 = vmatpush1.bf16.msra.mxu0 0
    %349 = vmatprep.subr.bf16.mxu0 0
    %350 = vmatpush1.bf16.msra.mxu0 0
    %351 = vmatprep.subr.bf16.mxu0 0
    %352 = vmatpush1.bf16.msra.mxu0 0
    %353 = vmatprep.subr.bf16.mxu0 0
    %354 = vmatpush1.bf16.msra.mxu0 0
    %355 = vmatprep.subr.bf16.mxu0 0
    %356 = vmatpush1.bf16.msra.mxu0 0
    %357 = vmatprep.mubr.bf16.mxu0 0
    %358 = vmatmul.mubr.bf16.gmra.mrb[0].mxu0 %v69
    %v359 = vpop.f32.mrb[0].mxu0
    %v360 = vadd.f32 %v115, %v359
    %v361 = vpop.f32.mrb[0].mxu0
    %v362 = vadd.f32 %v119, %v361
    %v363 = vpop.f32.mrb[0].mxu0
    %v364 = vpop.f32.mrb[0].mxu0
    %365 = vdwg.mxu0
    %vm366 = vcmp.ge.f32.partialorder %v319, 0.0
    %vm367 = vcmp.ge.f32.partialorder %v321, 0.0
    %vm368 = vcmp.ge.f32.partialorder %v360, 0.0
    %vm369 = vcmp.ge.f32.partialorder %v362, 0.0
    %v370 = vmul.f32 %v319, 0.01
    %v371 = vmul.f32 %v321, 0.01
    %v372 = vmul.f32 %v360, 0.01
    %v373 = vmul.f32 %v362, 0.01
    %v374 = vsel %vm366, %v319, %v370
    %v375 = vsel %vm367, %v321, %v371
    %v376 = vsel %vm368, %v360, %v372
    %v377 = vsel %vm369, %v362, %v373
    %v378 = vpack.c.bf16 %v374, %v374
    %v379 = vpack.c.bf16 %v375, %v375
    %v380 = vpack.c.bf16 %v376, %v376
    %v381 = vpack.c.bf16 %v377, %v377
    %v382 = vld [vmem:[#allocation8] sm:$0xf]
    %v383 = vld [vmem:[#allocation8 + $0x4] sm:$0xf]
    %v384 = vld [vmem:[#allocation8 + $0x8] sm:$0xf]
    %v385 = vld [vmem:[#allocation8 + $0xc] sm:$0xf]
    %v386 = vld [vmem:[#allocation8 + $0x10] sm:$0xf]
    %v387 = vld [vmem:[#allocation8 + $0x14] sm:$0xf]
    %v388 = vld [vmem:[#allocation8 + $0x18] sm:$0xf]
    %v389 = vld [vmem:[#allocation8 + $0x1c] sm:$0xf]
    %v390 = vld [vmem:[#allocation8 + $0x20] sm:$0xf]
    %v391 = vld [vmem:[#allocation8 + $0x24] sm:$0xf]
    %v392 = vld [vmem:[#allocation8 + $0x28] sm:$0xf]
    %v393 = vld [vmem:[#allocation8 + $0x2c] sm:$0xf]
    %v394 = vld [vmem:[#allocation8 + $0x30] sm:$0xf]
    %v395 = vld [vmem:[#allocation8 + $0x34] sm:$0xf]
    %v396 = vld [vmem:[#allocation8 + $0x38] sm:$0xf]
    %v397 = vld [vmem:[#allocation8 + $0x3c] sm:$0xf]
    %v398 = vld [vmem:[#allocation8 + $0x40] sm:$0xf]
    %v399 = vld [vmem:[#allocation8 + $0x44] sm:$0xf]
    %v400 = vld [vmem:[#allocation8 + $0x48] sm:$0xf]
    %v401 = vld [vmem:[#allocation8 + $0x4c] sm:$0xf]
    %v402 = vld [vmem:[#allocation8 + $0x50] sm:$0xf]
    %v403 = vld [vmem:[#allocation8 + $0x54] sm:$0xf]
    %v404 = vld [vmem:[#allocation8 + $0x58] sm:$0xf]
    %v405 = vld [vmem:[#allocation8 + $0x5c] sm:$0xf]
    %v406 = vld [vmem:[#allocation8 + $0x60] sm:$0xf]
    %v407 = vld [vmem:[#allocation8 + $0x64] sm:$0xf]
    %v408 = vld [vmem:[#allocation8 + $0x68] sm:$0xf]
    %v409 = vld [vmem:[#allocation8 + $0x6c] sm:$0xf]
    %v410 = vld [vmem:[#allocation8 + $0x70] sm:$0xf]
    %v411 = vld [vmem:[#allocation8 + $0x74] sm:$0xf]
    %v412 = vld [vmem:[#allocation8 + $0x78] sm:$0xf]
    %v413 = vld [vmem:[#allocation8 + $0x7c] sm:$0xf]
    %v414 = vld [vmem:[#allocation8 + $0x80] sm:$0xf]
    %v415 = vld [vmem:[#allocation8 + $0x84] sm:$0xf]
    %v416 = vld [vmem:[#allocation8 + $0x88] sm:$0xf]
    %v417 = vld [vmem:[#allocation8 + $0x8c] sm:$0xf]
    %v418 = vld [vmem:[#allocation8 + $0x90] sm:$0xf]
    %v419 = vld [vmem:[#allocation8 + $0x94] sm:$0xf]
    %v420 = vld [vmem:[#allocation8 + $0x98] sm:$0xf]
    %v421 = vld [vmem:[#allocation8 + $0x9c] sm:$0xf]
    %v422 = vld [vmem:[#allocation8 + $0xa0] sm:$0xf]
    %v423 = vld [vmem:[#allocation8 + $0xa4] sm:$0xf]
    %v424 = vld [vmem:[#allocation8 + $0xa8] sm:$0xf]
    %v425 = vld [vmem:[#allocation8 + $0xac] sm:$0xf]
    %v426 = vld [vmem:[#allocation8 + $0xb0] sm:$0xf]
    %v427 = vld [vmem:[#allocation8 + $0xb4] sm:$0xf]
    %v428 = vld [vmem:[#allocation8 + $0xb8] sm:$0xf]
    %v429 = vld [vmem:[#allocation8 + $0xbc] sm:$0xf]
    %v430 = vld [vmem:[#allocation8 + $0xc0] sm:$0xf]
    %v431 = vld [vmem:[#allocation8 + $0xc4] sm:$0xf]
    %v432 = vld [vmem:[#allocation8 + $0xc8] sm:$0xf]
    %v433 = vld [vmem:[#allocation8 + $0xcc] sm:$0xf]
    %v434 = vld [vmem:[#allocation8 + $0xd0] sm:$0xf]
    %v435 = vld [vmem:[#allocation8 + $0xd4] sm:$0xf]
    %v436 = vld [vmem:[#allocation8 + $0xd8] sm:$0xf]
    %v437 = vld [vmem:[#allocation8 + $0xdc] sm:$0xf]
    %v438 = vld [vmem:[#allocation8 + $0xe0] sm:$0xf]
    %v439 = vld [vmem:[#allocation8 + $0xe4] sm:$0xf]
    %v440 = vld [vmem:[#allocation8 + $0xe8] sm:$0xf]
    %v441 = vld [vmem:[#allocation8 + $0xec] sm:$0xf]
    %v442 = vld [vmem:[#allocation8 + $0xf0] sm:$0xf]
    %v443 = vld [vmem:[#allocation8 + $0xf4] sm:$0xf]
    %v444 = vld [vmem:[#allocation8 + $0xf8] sm:$0xf]
    %v445 = vld [vmem:[#allocation8 + $0xfc] sm:$0xf]
    %v446 = vld [vmem:[%s4] sm:$0x1]
    %v448 = vlaneseq
    %v449 = vshrl.u32 %v448, 7
    %v450 = vsub.s32 0, %v449
    %v451 = vrot.slane %v446, %v450
    %v517 = vunpack.c.l.b16 %v382
    %v518 = vunpack.c.l.b16 %v383
    %v519 = vunpack.c.l.b16 %v384
    %v520 = vunpack.c.l.b16 %v385
    %v521 = vunpack.c.l.b16 %v386
    %v522 = vunpack.c.l.b16 %v387
    %v523 = vunpack.c.l.b16 %v388
    %v524 = vunpack.c.l.b16 %v389
    %v525 = vunpack.c.l.b16 %v390
    %v526 = vunpack.c.l.b16 %v391
    %v527 = vunpack.c.l.b16 %v392
    %v528 = vunpack.c.l.b16 %v393
    %v529 = vunpack.c.l.b16 %v394
    %v530 = vunpack.c.l.b16 %v395
    %v531 = vunpack.c.l.b16 %v396
    %v532 = vunpack.c.l.b16 %v397
    %v533 = vunpack.c.l.b16 %v398
    %v534 = vunpack.c.l.b16 %v399
    %v535 = vunpack.c.l.b16 %v400
    %v536 = vunpack.c.l.b16 %v401
    %v537 = vunpack.c.l.b16 %v402
    %v538 = vunpack.c.l.b16 %v403
    %v539 = vunpack.c.l.b16 %v404
    %v540 = vunpack.c.l.b16 %v405
    %v541 = vunpack.c.l.b16 %v406
    %v542 = vunpack.c.l.b16 %v407
    %v543 = vunpack.c.l.b16 %v408
    %v544 = vunpack.c.l.b16 %v409
    %v545 = vunpack.c.l.b16 %v410
    %v546 = vunpack.c.l.b16 %v411
    %v547 = vunpack.c.l.b16 %v412
    %v548 = vunpack.c.l.b16 %v413
    %v549 = vunpack.c.l.b16 %v414
    %v550 = vunpack.c.l.b16 %v415
    %v551 = vunpack.c.l.b16 %v416
    %v552 = vunpack.c.l.b16 %v417
    %v553 = vunpack.c.l.b16 %v418
    %v554 = vunpack.c.l.b16 %v419
    %v555 = vunpack.c.l.b16 %v420
    %v556 = vunpack.c.l.b16 %v421
    %v557 = vunpack.c.l.b16 %v422
    %v558 = vunpack.c.l.b16 %v423
    %v559 = vunpack.c.l.b16 %v424
    %v560 = vunpack.c.l.b16 %v425
    %v561 = vunpack.c.l.b16 %v426
    %v562 = vunpack.c.l.b16 %v427
    %v563 = vunpack.c.l.b16 %v428
    %v564 = vunpack.c.l.b16 %v429
    %v565 = vunpack.c.l.b16 %v430
    %v566 = vunpack.c.l.b16 %v431
    %v567 = vunpack.c.l.b16 %v432
    %v568 = vunpack.c.l.b16 %v433
    %v569 = vunpack.c.l.b16 %v434
    %v570 = vunpack.c.l.b16 %v435
    %v571 = vunpack.c.l.b16 %v436
    %v572 = vunpack.c.l.b16 %v437
    %v573 = vunpack.c.l.b16 %v438
    %v574 = vunpack.c.l.b16 %v439
    %v575 = vunpack.c.l.b16 %v440
    %v576 = vunpack.c.l.b16 %v441
    %v577 = vunpack.c.l.b16 %v442
    %v578 = vunpack.c.l.b16 %v443
    %v579 = vunpack.c.l.b16 %v444
    %v580 = vunpack.c.l.b16 %v445
    %v581 = vpack.c.b16 %v518, %v517
    %v582 = vpack.c.b16 %v520, %v519
    %v583 = vpack.c.b16 %v522, %v521
    %v584 = vpack.c.b16 %v524, %v523
    %v585 = vpack.c.b16 %v526, %v525
    %v586 = vpack.c.b16 %v528, %v527
    %v587 = vpack.c.b16 %v530, %v529
    %v588 = vpack.c.b16 %v532, %v531
    %v589 = vpack.c.b16 %v534, %v533
    %v590 = vpack.c.b16 %v536, %v535
    %v591 = vpack.c.b16 %v538, %v537
    %v592 = vpack.c.b16 %v540, %v539
    %v593 = vpack.c.b16 %v542, %v541
    %v594 = vpack.c.b16 %v544, %v543
    %v595 = vpack.c.b16 %v546, %v545
    %v596 = vpack.c.b16 %v548, %v547
    %v597 = vpack.c.b16 %v550, %v549
    %v598 = vpack.c.b16 %v552, %v551
    %v599 = vpack.c.b16 %v554, %v553
    %v600 = vpack.c.b16 %v556, %v555
    %v601 = vpack.c.b16 %v558, %v557
    %v602 = vpack.c.b16 %v560, %v559
    %v603 = vpack.c.b16 %v562, %v561
    %v604 = vpack.c.b16 %v564, %v563
    %v605 = vpack.c.b16 %v566, %v565
    %v606 = vpack.c.b16 %v568, %v567
    %v607 = vpack.c.b16 %v570, %v569
    %v608 = vpack.c.b16 %v572, %v571
    %v609 = vpack.c.b16 %v574, %v573
    %v610 = vpack.c.b16 %v576, %v575
    %v611 = vpack.c.b16 %v578, %v577
    %v612 = vpack.c.b16 %v580, %v579
    %645 = vmatprep.subr.bf16.mxu0 0
    %646 = vmatpush1.bf16.msra.mxu0 %v581
    %647 = vmatprep.subr.bf16.mxu0 0
    %648 = vmatpush1.bf16.msra.mxu0 %v582
    %649 = vmatprep.subr.bf16.mxu0 0
    %650 = vmatpush1.bf16.msra.mxu0 %v583
    %651 = vmatprep.subr.bf16.mxu0 0
    %652 = vmatpush1.bf16.msra.mxu0 %v584
    %653 = vmatprep.subr.bf16.mxu0 0
    %654 = vmatpush1.bf16.msra.mxu0 %v585
    %655 = vmatprep.subr.bf16.mxu0 0
    %656 = vmatpush1.bf16.msra.mxu0 %v586
    %657 = vmatprep.subr.bf16.mxu0 0
    %658 = vmatpush1.bf16.msra.mxu0 %v587
    %659 = vmatprep.subr.bf16.mxu0 0
    %660 = vmatpush1.bf16.msra.mxu0 %v588
    %661 = vmatprep.subr.bf16.mxu0 0
    %662 = vmatpush1.bf16.msra.mxu0 %v589
    %663 = vmatprep.subr.bf16.mxu0 0
    %664 = vmatpush1.bf16.msra.mxu0 %v590
    %665 = vmatprep.subr.bf16.mxu0 0
    %666 = vmatpush1.bf16.msra.mxu0 %v591
    %667 = vmatprep.subr.bf16.mxu0 0
    %668 = vmatpush1.bf16.msra.mxu0 %v592
    %669 = vmatprep.subr.bf16.mxu0 0
    %670 = vmatpush1.bf16.msra.mxu0 %v593
    %671 = vmatprep.subr.bf16.mxu0 0
    %672 = vmatpush1.bf16.msra.mxu0 %v594
    %673 = vmatprep.subr.bf16.mxu0 0
    %674 = vmatpush1.bf16.msra.mxu0 %v595
    %675 = vmatprep.subr.bf16.mxu0 0
    %676 = vmatpush1.bf16.msra.mxu0 %v596
    %677 = vmatprep.mubr.bf16.mxu0 %v379
    %678 = vmatmul.mubr.bf16.gmra.mrb[0].mxu0 %v378
    %v679 = vpop.f32.mrb[0].mxu0
    %v680 = vadd.f32 %v451, %v679
    %v681 = vpop.f32.mrb[0].mxu0
    %v682 = vpop.f32.mrb[0].mxu0
    %v683 = vpop.f32.mrb[0].mxu0
    %684 = vdwg.mxu0
    %685 = vmatprep.subr.bf16.mxu0 0
    %686 = vmatpush1.bf16.msra.mxu0 %v597
    %687 = vmatprep.subr.bf16.mxu0 0
    %688 = vmatpush1.bf16.msra.mxu0 %v598
    %689 = vmatprep.subr.bf16.mxu0 0
    %690 = vmatpush1.bf16.msra.mxu0 %v599
    %691 = vmatprep.subr.bf16.mxu0 0
    %692 = vmatpush1.bf16.msra.mxu0 %v600
    %693 = vmatprep.subr.bf16.mxu0 0
    %694 = vmatpush1.bf16.msra.mxu0 %v601
    %695 = vmatprep.subr.bf16.mxu0 0
    %696 = vmatpush1.bf16.msra.mxu0 %v602
    %697 = vmatprep.subr.bf16.mxu0 0
    %698 = vmatpush1.bf16.msra.mxu0 %v603
    %699 = vmatprep.subr.bf16.mxu0 0
    %700 = vmatpush1.bf16.msra.mxu0 %v604
    %701 = vmatprep.subr.bf16.mxu0 0
    %702 = vmatpush1.bf16.msra.mxu0 %v605
    %703 = vmatprep.subr.bf16.mxu0 0
    %704 = vmatpush1.bf16.msra.mxu0 %v606
    %705 = vmatprep.subr.bf16.mxu0 0
    %706 = vmatpush1.bf16.msra.mxu0 %v607
    %707 = vmatprep.subr.bf16.mxu0 0
    %708 = vmatpush1.bf16.msra.mxu0 %v608
    %709 = vmatprep.subr.bf16.mxu0 0
    %710 = vmatpush1.bf16.msra.mxu0 %v609
    %711 = vmatprep.subr.bf16.mxu0 0
    %712 = vmatpush1.bf16.msra.mxu0 %v610
    %713 = vmatprep.subr.bf16.mxu0 0
    %714 = vmatpush1.bf16.msra.mxu0 %v611
    %715 = vmatprep.subr.bf16.mxu0 0
    %716 = vmatpush1.bf16.msra.mxu0 %v612
    %717 = vmatprep.mubr.bf16.mxu0 %v381
    %718 = vmatmul.mubr.bf16.gmra.mrb[0].mxu0 %v380
    %v719 = vpop.f32.mrb[0].mxu0
    %v720 = vadd.f32 %v680, %v719
    %v721 = vpop.f32.mrb[0].mxu0
    %v722 = vpop.f32.mrb[0].mxu0
    %v723 = vpop.f32.mrb[0].mxu0
    %724 = vdwg.mxu0
    %vm725 = vcmp.ge.f32.partialorder %v720, 0.0
    %v726 = vmul.f32 %v720, 0.01
    %v727 = vsel %vm725, %v720, %v726
    %v728 = vld [vmem:[%s5] sm:$0x1]
    %v730 = vlaneseq
    %v731 = vshrl.u32 %v730, 7
    %v732 = vsub.s32 0, %v731
    %v733 = vrot.slane %v728, %v732
    %v735 = vmul.f32 %v727, %v733
    %736 = vadd.xlane.f32.xlu0 %v735
    %v737 = vpop.xlane.xlu0 %736
    %s738 = sld [smem:[#allocation2]]
    %v739 = vstv %s738
    %v740 = vadd.f32 %v737, %v739
    %v741 = vsub.f32 0.0, %v740
    %v742 = vmul.f32 %v741, 1.442695
    %v743 = vpow.pop %v742
    %v744 = vadd.f32 %v743, 1.0
    %v745 = vrcp.pop %v744
    %746 = vxpose.xlu0.b32.start [1/16] %v745, 128
    %747 = vxpose.xlu0.b32.cont [2/16] 0.0, 128
    %748 = vxpose.xlu0.b32.cont [3/16] 0.0, 128
    %749 = vxpose.xlu0.b32.cont [4/16] 0.0, 128
    %750 = vxpose.xlu0.b32.cont [5/16] 0.0, 128
    %751 = vxpose.xlu0.b32.cont [6/16] 0.0, 128
    %752 = vxpose.xlu0.b32.cont [7/16] 0.0, 128
    %753 = vxpose.xlu0.b32.cont [8/16] 0.0, 128
    %754 = vxpose.xlu0.b32.cont [9/16] 0.0, 128
    %755 = vxpose.xlu0.b32.cont [10/16] 0.0, 128
    %756 = vxpose.xlu0.b32.cont [11/16] 0.0, 128
    %757 = vxpose.xlu0.b32.cont [12/16] 0.0, 128
    %758 = vxpose.xlu0.b32.cont [13/16] 0.0, 128
    %759 = vxpose.xlu0.b32.cont [14/16] 0.0, 128
    %760 = vxpose.xlu0.b32.cont [15/16] 0.0, 128
    %761 = vxpose.xlu0.b32.end [16/16] 0.0, 128
    %v762 = vpop.trf.xlu0
    %v763 = vpop.trf.xlu0
    %v764 = vpop.trf.xlu0
    %v765 = vpop.trf.xlu0
    %v766 = vpop.trf.xlu0
    %v767 = vpop.trf.xlu0
    %v768 = vpop.trf.xlu0
    %v769 = vpop.trf.xlu0
    %v770 = vpop.trf.xlu0
    %v771 = vpop.trf.xlu0
    %v772 = vpop.trf.xlu0
    %v773 = vpop.trf.xlu0
    %v774 = vpop.trf.xlu0
    %v775 = vpop.trf.xlu0
    %v776 = vpop.trf.xlu0
    %v777 = vpop.trf.xlu0
    %vm778 = vcmask 57344
    %779 = vst.msk [vmem:[#allocation9] sm:$0x1] %vm778, %v762
    // Predicated region
    $region42: #{tpu_custom_call.1} parent=1 // pred_check
      _
    $region43: #{tpu_custom_call.1} parent=1 // pred_check_branch
      %781 = sbr.rel (0) target = $region45
    $region44: #{tpu_custom_call.1} parent=1 // pred_region
      %s783 = ssub.s32 16, 16
      %784 = vsyncadd [#allocation5], %s783
      %s786 = sshll.u32 [#allocation9], 4
      %s787 = int_to_ptr.vmem [resolvable:$true] %s786
      %789 = dma.vmem_to_hbm [thread:$0]  %s787, 16, %s7, [#allocation5]
    $region45: #{tpu_custom_call.1} parent=1 // pred_fallthru
      _
    // Predicated region
    $region46: #{tpu_custom_call.1} parent=1 // pred_check
      _
    $region47: #{tpu_custom_call.1} parent=1 // pred_check_branch
      %791 = sbr.rel (0) target = $region49
    $region48: #{tpu_custom_call.1} parent=1 // pred_region
      %792 = dma.done [#allocation5], 16
    $region49: #{tpu_custom_call.1} parent=1 // pred_fallthru
      _
    %793 = vsyncpa [#allocation4], 1
    %794 = vsyncpa [#allocation7], 1
    %795 = vsyncpa [#allocation5], 1

</llo_original>
